<compile_context>
chip_gen: v7x
topology: tpu7x:2x2x1
jax: 0.10.0
libtpu: 0.0.40
codegen_flags: <defaults>
</compile_context>

<pallas_src>
import jax
import jax.numpy as jnp
from jax.experimental import pallas as pl
from jax.experimental.pallas import tpu as pltpu

IN_FEATURES = 3334
HIDDEN = 271
OUT_FEATURES = 6


def _round_up(n, m):
    return ((n + m - 1) // m) * m


def mlp_kernel(x_ref, w1_ref, b1_ref, w2_ref, b2_ref, o_ref, acc_ref):
    k = pl.program_id(1)

    @pl.when(k == 0)
    def _():
        acc_ref[...] = jnp.zeros_like(acc_ref)

    # Partial first linear over this K-chunk (bf16 operands, f32 accumulate).
    acc_ref[...] += jnp.dot(
        x_ref[...], w1_ref[...], preferred_element_type=jnp.float32
    )

    @pl.when(k == pl.num_programs(1) - 1)
    def _():
        # Bias + ReLU, then the tiny second linear, then (eval) dropout = id.
        h = jnp.maximum(acc_ref[...] + b1_ref[...], 0.0)
        y = jnp.dot(h, w2_ref[...], preferred_element_type=jnp.float32)
        y = y + b2_ref[...]
        o_ref[...] = y.astype(o_ref.dtype)


def mlp_forward(x, w1, b1, w2, b2, *, tile_b=256, tile_k=896):
    B = x.shape[0]

    # Batch tile: multiple of 16 (bf16 sublane packing), capped at tile_b.
    tb = min(tile_b, _round_up(B, 16))
    b_pad = _round_up(B, tb)
    k_pad = _round_up(IN_FEATURES, tile_k)

    # bf16 storage for the big streams; zero-pad K (exact for the dot) and B.
    xb = x.astype(jnp.bfloat16)
    w1b = w1.astype(jnp.bfloat16)
    if b_pad != B or k_pad != IN_FEATURES:
        xb = jnp.pad(xb, ((0, b_pad - B), (0, k_pad - IN_FEATURES)))
    if k_pad != IN_FEATURES:
        w1b = jnp.pad(w1b, ((0, k_pad - IN_FEATURES), (0, 0)))

    grid = (b_pad // tb, k_pad // tile_k)

    out = pl.pallas_call(
        mlp_kernel,
        out_shape=jax.ShapeDtypeStruct((b_pad, OUT_FEATURES), jnp.float32),
        grid_spec=pltpu.PrefetchScalarGridSpec(
            num_scalar_prefetch=0,
            grid=grid,
            in_specs=[
                pl.BlockSpec((tb, tile_k), lambda b, k: (b, k)),           # x
                pl.BlockSpec((tile_k, HIDDEN), lambda b, k: (k, 0)),       # W1
                pl.BlockSpec((1, HIDDEN), lambda b, k: (0, 0)),            # b1
                pl.BlockSpec((HIDDEN, OUT_FEATURES), lambda b, k: (0, 0)), # W2
                pl.BlockSpec((1, OUT_FEATURES), lambda b, k: (0, 0)),      # b2
            ],
            out_specs=pl.BlockSpec((tb, OUT_FEATURES), lambda b, k: (b, 0)),
            scratch_shapes=[pltpu.VMEM((tb, HIDDEN), jnp.float32)],
        ),
        compiler_params=pltpu.CompilerParams(
            dimension_semantics=("parallel", "arbitrary"),
            vmem_limit_bytes=32 << 20,
        ),
    )(xb, w1b, b1, w2, b2)

    return out[:B]


def init_params(key):
    """Deterministic init mimicking PyTorch Linear default (U[-1/sqrt(fan_in), +]).

    W1 is kept in bfloat16 (storage dtype for the dominant HBM stream);
    W2 and biases stay float32 (tiny).
    """
    k1, k2, k3, k4 = jax.random.split(key, 4)
    bound1 = 1.0 / jnp.sqrt(IN_FEATURES)
    bound2 = 1.0 / jnp.sqrt(HIDDEN)
    w1 = jax.random.uniform(
        k1, (IN_FEATURES, HIDDEN), jnp.float32, -bound1, bound1
    ).astype(jnp.bfloat16)
    b1 = jax.random.uniform(k2, (1, HIDDEN), jnp.float32, -bound1, bound1)
    w2 = jax.random.uniform(k3, (HIDDEN, OUT_FEATURES), jnp.float32, -bound2, bound2)
    b2 = jax.random.uniform(k4, (1, OUT_FEATURES), jnp.float32, -bound2, bound2)
    return w1, b1, w2, b2


if __name__ == "__main__":
    key = jax.random.PRNGKey(0)
    kx, kp = jax.random.split(key)

    B = 8  # small batch
    x = jax.random.normal(kx, (B, IN_FEATURES), jnp.float32)
    w1, b1, w2, b2 = init_params(kp)

    out = jax.block_until_ready(mlp_forward(x, w1, b1, w2, b2))

    # Reference in plain JAX with the same bf16 rounding of x / W1.
    xb = x.astype(jnp.bfloat16)
    ref_h = jnp.maximum(
        jnp.dot(xb, w1, preferred_element_type=jnp.float32) + b1, 0.0
    )
    ref = jnp.dot(ref_h, w2, preferred_element_type=jnp.float32) + b2

    assert out.shape == (B, OUT_FEATURES)
    assert jnp.allclose(out, ref, atol=1e-2, rtol=1e-2), "mismatch vs. JAX reference"

    print("KERNEL_OK")
</pallas_src>

<mosaic_0001>
module attributes {stable_mosaic.version = 11 : i64} {
  func.func @mlp_kernel(%arg0: i32, %arg1: i32, %arg2: memref<16x896xbf16, #tpu.memory_space<vmem>>, %arg3: memref<896x271xbf16, #tpu.memory_space<vmem>>, %arg4: memref<1x271xf32, #tpu.memory_space<vmem>>, %arg5: memref<271x6xf32, #tpu.memory_space<vmem>>, %arg6: memref<1x6xf32, #tpu.memory_space<vmem>>, %arg7: memref<16x6xf32, #tpu.memory_space<vmem>>, %arg8: memref<16x271xf32, #tpu.memory_space<vmem>>) attributes {dimension_semantics = [#tpu.dimension_semantics<parallel>, #tpu.dimension_semantics<arbitrary>], iteration_bounds = array<i64: 1, 4>, scalar_prefetch = 0 : i64, scratch_operands = 1 : i64, tpu.core_type = #tpu.core_type<tc>, window_params = [{transform_indices = @transform_0, window_bounds = array<i64: 16, 896>}, {transform_indices = @transform_1, window_bounds = array<i64: 896, 271>}, {pipeline_mode = #tpu.pipeline_mode<synchronous>, transform_indices = @transform_2, window_bounds = array<i64: 1, 271>}, {pipeline_mode = #tpu.pipeline_mode<synchronous>, transform_indices = @transform_3, window_bounds = array<i64: 271, 6>}, {pipeline_mode = #tpu.pipeline_mode<synchronous>, transform_indices = @transform_4, window_bounds = array<i64: 1, 6>}, {transform_indices = @transform_5, window_bounds = array<i64: 16, 6>}]} {
    %c0_i32 = arith.constant 0 : i32
    %0 = arith.cmpi eq, %arg1, %c0_i32 : i32
    %1 = arith.extui %0 : i1 to i32
    %c0_i32_0 = arith.constant 0 : i32
    %2 = arith.cmpi ne, %1, %c0_i32_0 : i32
    scf.if %2 {
      %cst_9 = arith.constant 0.000000e+00 : f32
      %12 = vector.broadcast %cst_9 : f32 to vector<16x271xf32>
      %c0_10 = arith.constant 0 : index
      %c0_11 = arith.constant 0 : index
      %13 = vector.load %arg8[%c0_10, %c0_11] : memref<16x271xf32, #tpu.memory_space<vmem>>, vector<16x271xf32>
      tpu.vector_store %arg8[%c0_10, %c0_11], %12 {strides = array<i32>} : memref<16x271xf32, #tpu.memory_space<vmem>>, vector<16x271xf32>,
    } else {
    }
    %c0 = arith.constant 0 : index
    %c0_1 = arith.constant 0 : index
    %3 = vector.load %arg8[%c0, %c0_1] : memref<16x271xf32, #tpu.memory_space<vmem>>, vector<16x271xf32>
    %c0_2 = arith.constant 0 : index
    %c0_3 = arith.constant 0 : index
    %4 = vector.load %arg2[%c0_2, %c0_3] : memref<16x896xbf16, #tpu.memory_space<vmem>>, vector<16x896xbf16>
    %c0_4 = arith.constant 0 : index
    %c0_5 = arith.constant 0 : index
    %5 = vector.load %arg3[%c0_4, %c0_5] : memref<896x271xbf16, #tpu.memory_space<vmem>>, vector<896x271xbf16>
    %cst = arith.constant dense<0.000000e+00> : vector<16x271xf32>
    %6 = tpu.matmul %4, %5, %cst {dimension_numbers = #tpu.dot_dimension_numbers<[1], [0], [0], [1], [0, 0, 1, 1], [], []>} : vector<16x896xbf16>, vector<896x271xbf16>, vector<16x271xf32> -> vector<16x271xf32>
    %7 = arith.addf %3, %6 : vector<16x271xf32>
    %c0_6 = arith.constant 0 : index
    %c0_7 = arith.constant 0 : index
    %8 = vector.load %arg8[%c0_6, %c0_7] : memref<16x271xf32, #tpu.memory_space<vmem>>, vector<16x271xf32>
    tpu.vector_store %arg8[%c0_6, %c0_7], %7 {strides = array<i32>} : memref<16x271xf32, #tpu.memory_space<vmem>>, vector<16x271xf32>,
    %c3_i32 = arith.constant 3 : i32
    %9 = arith.cmpi eq, %arg1, %c3_i32 : i32
    %10 = arith.extui %9 : i1 to i32
    %c0_i32_8 = arith.constant 0 : i32
    %11 = arith.cmpi ne, %10, %c0_i32_8 : i32
    scf.if %11 {
      %c0_9 = arith.constant 0 : index
      %c0_10 = arith.constant 0 : index
      %12 = vector.load %arg8[%c0_9, %c0_10] : memref<16x271xf32, #tpu.memory_space<vmem>>, vector<16x271xf32>
      %c0_11 = arith.constant 0 : index
      %c0_12 = arith.constant 0 : index
      %13 = vector.load %arg4[%c0_11, %c0_12] : memref<1x271xf32, #tpu.memory_space<vmem>>, vector<1x271xf32>
      %14 = vector.broadcast %13 : vector<1x271xf32> to vector<16x271xf32>
      %15 = arith.addf %12, %14 : vector<16x271xf32>
      %cst_13 = arith.constant 0.000000e+00 : f32
      %16 = vector.broadcast %cst_13 : f32 to vector<16x271xf32>
      %17 = arith.maximumf %15, %16 : vector<16x271xf32>
      %c0_14 = arith.constant 0 : index
      %c0_15 = arith.constant 0 : index
      %18 = vector.load %arg5[%c0_14, %c0_15] : memref<271x6xf32, #tpu.memory_space<vmem>>, vector<271x6xf32>
      %cst_16 = arith.constant dense<0.000000e+00> : vector<16x6xf32>
      %19 = tpu.matmul %17, %18, %cst_16 {dimension_numbers = #tpu.dot_dimension_numbers<[1], [0], [0], [1], [0, 0, 1, 1], [], []>} : vector<16x271xf32>, vector<271x6xf32>, vector<16x6xf32> -> vector<16x6xf32>
      %c0_17 = arith.constant 0 : index
      %c0_18 = arith.constant 0 : index
      %20 = vector.load %arg6[%c0_17, %c0_18] : memref<1x6xf32, #tpu.memory_space<vmem>>, vector<1x6xf32>
      %21 = vector.broadcast %20 : vector<1x6xf32> to vector<16x6xf32>
      %22 = arith.addf %19, %21 : vector<16x6xf32>
      %c0_19 = arith.constant 0 : index
      %c0_20 = arith.constant 0 : index
      %23 = vector.load %arg7[%c0_19, %c0_20] : memref<16x6xf32, #tpu.memory_space<vmem>>, vector<16x6xf32>
      tpu.vector_store %arg7[%c0_19, %c0_20], %22 {strides = array<i32>} : memref<16x6xf32, #tpu.memory_space<vmem>>, vector<16x6xf32>,
    } else {
    }
    return
  }
  func.func @transform_0(%arg0: i32, %arg1: i32) -> (i32, i32) {
    %c0_i32 = arith.constant 0 : i32
    return %arg0, %arg1 : i32, i32
  }
  func.func @transform_1(%arg0: i32, %arg1: i32) -> (i32, i32) {
    %c0_i32 = arith.constant 0 : i32
    %c0_i32_0 = arith.constant 0 : i32
    return %arg1, %c0_i32 : i32, i32
  }
  func.func @transform_2(%arg0: i32, %arg1: i32) -> (i32, i32) {
    %c0_i32 = arith.constant 0 : i32
    %c0_i32_0 = arith.constant 0 : i32
    %c0_i32_1 = arith.constant 0 : i32
    return %c0_i32, %c0_i32_0 : i32, i32
  }
  func.func @transform_3(%arg0: i32, %arg1: i32) -> (i32, i32) {
    %c0_i32 = arith.constant 0 : i32
    %c0_i32_0 = arith.constant 0 : i32
    %c0_i32_1 = arith.constant 0 : i32
    return %c0_i32, %c0_i32_0 : i32, i32
  }
  func.func @transform_4(%arg0: i32, %arg1: i32) -> (i32, i32) {
    %c0_i32 = arith.constant 0 : i32
    %c0_i32_0 = arith.constant 0 : i32
    %c0_i32_1 = arith.constant 0 : i32
    return %c0_i32, %c0_i32_0 : i32, i32
  }
  func.func @transform_5(%arg0: i32, %arg1: i32) -> (i32, i32) {
    %c0_i32 = arith.constant 0 : i32
    %c0_i32_0 = arith.constant 0 : i32
    return %arg0, %c0_i32 : i32, i32
  }
}

</mosaic_0001>

<llo_original>
// kernel: tpu_custom_call.1
$region0: #{tpu_custom_call.1}
  #allocation0 [shape = 'u32[]', space=smem, size = 0x4, offset = 0x4, fixed_abs, tag = 'smem constant byte address 0x4 - core index']
  #allocation1 [shape = 'u32[144,128]{1,0:T(1,128)}', space=vmem, size = 0x12000, scoped, tag = 'internal scratch']
  #allocation2 [shape = 'f32[16,271]{1,0:T(8,128)}', space=vmem, size = 0x6000, scoped, tag = 'scratch operand']
  %s0 = inlined_call_operand.vmem [shape: bf16[16,3584], index: 0, kind: input, shape index: {}]
  %s1 = inlined_call_operand.vmem [shape: bf16[3584,271], index: 1, kind: input, shape index: {}]
  %s2 = inlined_call_operand.vmem [shape: f32[1,271], index: 2, kind: input, shape index: {}]
  %s3 = inlined_call_operand.vmem [shape: f32[271,6], index: 3, kind: input, shape index: {}]
  %s4 = inlined_call_operand.vmem [shape: f32[1,6], index: 4, kind: input, shape index: {}]
  %s5 = inlined_call_operand.vmem [shape: f32[16,6], index: 5, kind: output, shape index: {}]
  %s6 = sld [smem:[#allocation0]]
  $region87: #{tpu_custom_call.1} parent=0
    _
  %s8 = ssub.s32 1, %s6
  %s9 = scalar_select 0, %s8, %s6
  $region1: #{tpu_custom_call.1} parent=0
    #allocation3 [shape = 'u8[57344]{0}', space=vmem, size = 0xe000, scoped, tag = 'input window, operand 0']
    loop: start=0, step=1, limit=6
    $region2: #{tpu_custom_call.1} parent=1 // loop_pre_header
      _
    $region3: #{tpu_custom_call.1} parent=1 // loop_header
      %s11 = sphi 0, %s15
      %p12 = scmp.ge.s32.totalorder %s11, 6
      %s18 = sphi 0, %s30
      %s19 = sphi 0, %s26
      %s20 = sphi 0, %s18
      %s21 = sphi 0, %s19
      %s22 = sphi 0, %s20
      %s23 = sphi 0, %s21
      %s35 = sphi 0, %s37
      %s38 = sphi 0, %s35
      %s39 = sphi 0, %s38
      %s55 = sphi 0, %s39
      %s61 = sphi 0, %s63
      %s64 = sphi 0, %s61
      %s65 = sphi 0, %s64
      %s81 = sphi 0, %s65
      %s85 = sphi 0, %s85
      %s87 = sphi 0, %s85
      %s88 = sphi 0, %s87
      %s102 = sphi 0, %s88
      %s106 = sphi 0, %s106
      %s108 = sphi 0, %s106
      %s109 = sphi 0, %s108
      %s123 = sphi 0, %s109
      %s127 = sphi 0, %s127
      %s129 = sphi 0, %s127
      %s130 = sphi 0, %s129
      %s144 = sphi 0, %s130
      %s150 = sphi 0, %s152
      %s153 = sphi 0, %s150
      %s154 = sphi 0, %s153
      %s170 = sphi 0, %s154
    $region4: #{tpu_custom_call.1} parent=1 // loop_header_branch
      %14 = sbr.rel (%p12) target = $region8
    $region5: #{tpu_custom_call.1} parent=1 // loop_body
      %s16 = ssub.s32 %s11, 1
      %s17 = ssub.s32 %s11, 2
      %s24 = sadd.s32 1, %s19
      %p25 = scmp.ge.s32.totalorder %s24, 4
      %s26 = scalar_select %p25, 0, %s24
      %s27 = sadd.s32 1, %s18
      %s28 = scalar_select %p25, %s27, %s18
      %p29 = scmp.ge.s32.totalorder %s28, 1
      %s30 = scalar_select %p29, 0, %s28
      %s31 = ssub.s32 %s18, %s30
      %s32 = ssub.s32 %s19, %s26
      %s33 = sor.u32 %s31, %s32
      %p34 = scmp.eq.s32.totalorder %s33, 0
      %s36 = sadd.s32 %s35, 1
      %s37 = scalar_select %p34, %s35, %s36
      %p40 = pneg %p34
      %p41 = scmp.eq.s32.totalorder %s11, 3
      %p42 = por %p40, %p41
      %p43 = scmp.ne.s32.totalorder %s35, %s38
      %p44 = scmp.eq.s32.totalorder %s11, 0
      %p45 = por %p43, %p44
      %p46 = scmp.ne.s32.totalorder %s35, %s38
      %p47 = scmp.eq.s32.totalorder %s16, 3
      %p48 = por %p46, %p47
      %p49 = scmp.ne.s32.totalorder %s38, %s39
      %p50 = scmp.eq.s32.totalorder %s16, 0
      %p51 = por %p49, %p50
      %p52 = scmp.ne.s32.totalorder %s38, %s39
      %p53 = scmp.eq.s32.totalorder %s17, 3
      %p54 = por %p52, %p53
      %p56 = scmp.ne.s32.totalorder %s39, %s55
      %p57 = scmp.eq.s32.totalorder %s17, 0
      %p58 = por %p56, %p57
      %s59 = ssub.s32 %s19, %s26
      %p60 = scmp.eq.s32.totalorder %s59, 0
      %s62 = sadd.s32 %s61, 1
      %s63 = scalar_select %p60, %s61, %s62
      %p66 = pneg %p60
      %p67 = scmp.eq.s32.totalorder %s11, 3
      %p68 = por %p66, %p67
      %p69 = scmp.ne.s32.totalorder %s61, %s64
      %p70 = scmp.eq.s32.totalorder %s11, 0
      %p71 = por %p69, %p70
      %p72 = scmp.ne.s32.totalorder %s61, %s64
      %p73 = scmp.eq.s32.totalorder %s16, 3
      %p74 = por %p72, %p73
      %p75 = scmp.ne.s32.totalorder %s64, %s65
      %p76 = scmp.eq.s32.totalorder %s16, 0
      %p77 = por %p75, %p76
      %p78 = scmp.ne.s32.totalorder %s64, %s65
      %p79 = scmp.eq.s32.totalorder %s17, 3
      %p80 = por %p78, %p79
      %p82 = scmp.ne.s32.totalorder %s65, %s81
      %p83 = scmp.eq.s32.totalorder %s17, 0
      %p84 = por %p82, %p83
      %s86 = sadd.s32 %s85, 1
      %p89 = scmp.eq.s32.totalorder %s11, 3
      %p90 = scmp.ne.s32.totalorder %s85, %s87
      %p91 = scmp.eq.s32.totalorder %s11, 0
      %p92 = por %p90, %p91
      %p93 = scmp.ne.s32.totalorder %s85, %s87
      %p94 = scmp.eq.s32.totalorder %s16, 3
      %p95 = por %p93, %p94
      %p96 = scmp.ne.s32.totalorder %s87, %s88
      %p97 = scmp.eq.s32.totalorder %s16, 0
      %p98 = por %p96, %p97
      %p99 = scmp.ne.s32.totalorder %s87, %s88
      %p100 = scmp.eq.s32.totalorder %s17, 3
      %p101 = por %p99, %p100
      %p103 = scmp.ne.s32.totalorder %s88, %s102
      %p104 = scmp.eq.s32.totalorder %s17, 0
      %p105 = por %p103, %p104
      %s107 = sadd.s32 %s106, 1
      %p110 = scmp.eq.s32.totalorder %s11, 3
      %p111 = scmp.ne.s32.totalorder %s106, %s108
      %p112 = scmp.eq.s32.totalorder %s11, 0
      %p113 = por %p111, %p112
      %p114 = scmp.ne.s32.totalorder %s106, %s108
      %p115 = scmp.eq.s32.totalorder %s16, 3
      %p116 = por %p114, %p115
      %p117 = scmp.ne.s32.totalorder %s108, %s109
      %p118 = scmp.eq.s32.totalorder %s16, 0
      %p119 = por %p117, %p118
      %p120 = scmp.ne.s32.totalorder %s108, %s109
      %p121 = scmp.eq.s32.totalorder %s17, 3
      %p122 = por %p120, %p121
      %p124 = scmp.ne.s32.totalorder %s109, %s123
      %p125 = scmp.eq.s32.totalorder %s17, 0
      %p126 = por %p124, %p125
      %s128 = sadd.s32 %s127, 1
      %p131 = scmp.eq.s32.totalorder %s11, 3
      %p132 = scmp.ne.s32.totalorder %s127, %s129
      %p133 = scmp.eq.s32.totalorder %s11, 0
      %p134 = por %p132, %p133
      %p135 = scmp.ne.s32.totalorder %s127, %s129
      %p136 = scmp.eq.s32.totalorder %s16, 3
      %p137 = por %p135, %p136
      %p138 = scmp.ne.s32.totalorder %s129, %s130
      %p139 = scmp.eq.s32.totalorder %s16, 0
      %p140 = por %p138, %p139
      %p141 = scmp.ne.s32.totalorder %s129, %s130
      %p142 = scmp.eq.s32.totalorder %s17, 3
      %p143 = por %p141, %p142
      %p145 = scmp.ne.s32.totalorder %s130, %s144
      %p146 = scmp.eq.s32.totalorder %s17, 0
      %p147 = por %p145, %p146
      %s148 = ssub.s32 %s18, %s30
      %p149 = scmp.eq.s32.totalorder %s148, 0
      %s151 = sadd.s32 %s150, 1
      %s152 = scalar_select %p149, %s150, %s151
      %p155 = pneg %p149
      %p156 = scmp.eq.s32.totalorder %s11, 3
      %p157 = por %p155, %p156
      %p158 = scmp.ne.s32.totalorder %s150, %s153
      %p159 = scmp.eq.s32.totalorder %s11, 0
      %p160 = por %p158, %p159
      %p161 = scmp.ne.s32.totalorder %s150, %s153
      %p162 = scmp.eq.s32.totalorder %s16, 3
      %p163 = por %p161, %p162
      %p164 = scmp.ne.s32.totalorder %s153, %s154
      %p165 = scmp.eq.s32.totalorder %s16, 0
      %p166 = por %p164, %p165
      %p167 = scmp.ne.s32.totalorder %s153, %s154
      %p168 = scmp.eq.s32.totalorder %s17, 3
      %p169 = por %p167, %p168
      %p171 = scmp.ne.s32.totalorder %s154, %s170
      %p172 = scmp.eq.s32.totalorder %s17, 0
      %p173 = por %p171, %p172
      %p174 = scmp.le.s32.totalorder 1, %s11
      %p175 = scmp.lt.s32.totalorder %s11, 5
      %p176 = pnand %p174, %p175
      %p177 = pneg %p176
      // Predicated region
      $region9: #{tpu_custom_call.1} parent=5 // pred_check
        _
      $region10: #{tpu_custom_call.1} parent=5 // pred_check_branch
        %179 = sbr.rel (%p176) target = $region12
      $region11: #{tpu_custom_call.1} parent=5 // pred_region
        %s180 = ssub.s32 %s11, 1
        // Predicated region
        $region13: #{tpu_custom_call.1} parent=11 // pred_check
          %p181 = pneg %p98
        $region14: #{tpu_custom_call.1} parent=11 // pred_check_branch
          %183 = sbr.rel (%p181) target = $region16
        $region15: #{tpu_custom_call.1} parent=11 // pred_region
          _
        $region16: #{tpu_custom_call.1} parent=11 // pred_fallthru
          _
        // Predicated region
        $region17: #{tpu_custom_call.1} parent=11 // pred_check
          %p184 = pneg %p119
        $region18: #{tpu_custom_call.1} parent=11 // pred_check_branch
          %186 = sbr.rel (%p184) target = $region20
        $region19: #{tpu_custom_call.1} parent=11 // pred_region
          _
        $region20: #{tpu_custom_call.1} parent=11 // pred_fallthru
          _
        // Predicated region
        $region21: #{tpu_custom_call.1} parent=11 // pred_check
          %p187 = pneg %p140
        $region22: #{tpu_custom_call.1} parent=11 // pred_check_branch
          %189 = sbr.rel (%p187) target = $region24
        $region23: #{tpu_custom_call.1} parent=11 // pred_region
          _
        $region24: #{tpu_custom_call.1} parent=11 // pred_fallthru
          _
      $region12: #{tpu_custom_call.1} parent=5 // pred_fallthru
        _
      %p190 = scmp.lt.s32.totalorder %s11, 4
      // Predicated region
      $region25: #{tpu_custom_call.1} parent=5 // pred_check
        %p191 = pneg %p190
      $region26: #{tpu_custom_call.1} parent=5 // pred_check_branch
        %193 = sbr.rel (%p191) target = $region28
      $region27: #{tpu_custom_call.1} parent=5 // pred_region
        // Predicated region
        $region29: #{tpu_custom_call.1} parent=27 // pred_check
          %p194 = pneg %p45
        $region30: #{tpu_custom_call.1} parent=27 // pred_check_branch
          %196 = sbr.rel (%p194) target = $region32
        $region31: #{tpu_custom_call.1} parent=27 // pred_region
          %s197 = sand.u32 %s35, 1
          %s198 = sand.u32 %s35, 1
          %s199 = smul.addr %s198, 56
          %s200 = scalar_lea.vmem [#allocation3], %s199
          %s201 = smul.u32 2, %s18
          %s202 = smul.u32 7, %s19
          %s203 = smul.addr %s201, 28
          %s204 = sadd.s32 %s202, %s203
          %s205 = smul.addr %s204, 4
          %s206 = scalar_lea.vmem %s0, %s205
          // Predicated region
          $region33: #{tpu_custom_call.1} parent=31 // pred_check
            _
          $region34: #{tpu_custom_call.1} parent=31 // pred_check_branch
            %208 = sbr.rel (0) target = $region36
          $region35: #{tpu_custom_call.1} parent=31 // pred_region
            // Predicated region
            $region37: #{tpu_custom_call.1} parent=35 // pred_check
              _
            $region38: #{tpu_custom_call.1} parent=35 // pred_check_branch
              %210 = sbr.rel (0) target = $region40
            $region39: #{tpu_custom_call.1} parent=35 // pred_region
              %s211 = scalar_lea.vmem %s206, 24
              %s212 = scalar_lea.vmem %s200, 24 [#allocation3]
              loop: start=0, step=1, limit=1
              $region41: #{tpu_custom_call.1} parent=39 // loop_pre_header
                _
              $region42: #{tpu_custom_call.1} parent=39 // loop_header
                %s214 = sphi 0, %s218
                %p215 = scmp.ge.s32.totalorder %s214, 1
                %s219 = sphi %s206, %s206
                %s220 = sphi %s200, %s200
              $region43: #{tpu_custom_call.1} parent=39 // loop_header_branch
                %217 = sbr.rel (%p215) target = $region47
              $region44: #{tpu_custom_call.1} parent=39 // loop_body
                %v221 = vld [vmem:[%s219] sm:$0xff]
                %222 = vst [vmem:[%s220] sm:$0xff] %v221
                %v223 = vld [vmem:[%s219 + $0x8] sm:$0xff]
                %224 = vst [vmem:[%s220 + $0x8] sm:$0xff] %v223
                %v225 = vld [vmem:[%s219 + $0x10] sm:$0xff]
                %226 = vst [vmem:[%s220 + $0x10] sm:$0xff] %v225
                %v227 = vld [vmem:[%s219 + $0x70] sm:$0xff]
                %228 = vst [vmem:[%s220 + $0x1c] sm:$0xff] %v227
                %v229 = vld [vmem:[%s219 + $0x78] sm:$0xff]
                %230 = vst [vmem:[%s220 + $0x24] sm:$0xff] %v229
                %v231 = vld [vmem:[%s219 + $0x80] sm:$0xff]
                %232 = vst [vmem:[%s220 + $0x2c] sm:$0xff] %v231
              $region45: #{tpu_custom_call.1} parent=39 // loop_footer
                %s218 = sadd.s32 1, %s214
              $region46: #{tpu_custom_call.1} parent=39 // loop_footer_branch
                %213 = sbr.rel target = $region42
              $region47: #{tpu_custom_call.1} parent=39 // loop_exit
                _
              loop: start=0, step=1, limit=1
              $region48: #{tpu_custom_call.1} parent=39 // loop_pre_header
                _
              $region49: #{tpu_custom_call.1} parent=39 // loop_header
                %s235 = sphi 0, %s239
                %p236 = scmp.ge.s32.totalorder %s235, 1
                %s240 = sphi %s211, %s211
                %s241 = sphi %s212, %s212
              $region50: #{tpu_custom_call.1} parent=39 // loop_header_branch
                %238 = sbr.rel (%p236) target = $region54
              $region51: #{tpu_custom_call.1} parent=39 // loop_body
                %v242 = vld [vmem:[%s240] sm:$0xf]
                %243 = vst [vmem:[%s241] sm:$0xf] %v242
                %v244 = vld [vmem:[%s240 + $0x70] sm:$0xf]
                %245 = vst [vmem:[%s241 + $0x1c] sm:$0xf] %v244
              $region52: #{tpu_custom_call.1} parent=39 // loop_footer
                %s239 = sadd.s32 1, %s235
              $region53: #{tpu_custom_call.1} parent=39 // loop_footer_branch
                %234 = sbr.rel target = $region49
              $region54: #{tpu_custom_call.1} parent=39 // loop_exit
                _
            $region40: #{tpu_custom_call.1} parent=35 // pred_fallthru
              _
          $region36: #{tpu_custom_call.1} parent=31 // pred_fallthru
            _
          %246 = vnop
        $region32: #{tpu_custom_call.1} parent=27 // pred_fallthru
          _
        // Predicated region
        $region55: #{tpu_custom_call.1} parent=27 // pred_check
          %p247 = pneg %p71
        $region56: #{tpu_custom_call.1} parent=27 // pred_check_branch
          %249 = sbr.rel (%p247) target = $region58
        $region57: #{tpu_custom_call.1} parent=27 // pred_region
          %s250 = smul.u32 112, %s19
          %p251 = scmp.lt.s32.totalorder %s250, 447
          %s252 = scalar_select %p251, %s250, 447
          %s253 = smul.addr %s252, 3
          %s254 = smul.addr %s253, 4
          %s255 = scalar_lea.vmem %s1, %s254
          %s256 = smul.u32 112, %s19
        $region58: #{tpu_custom_call.1} parent=27 // pred_fallthru
          _
      $region28: #{tpu_custom_call.1} parent=5 // pred_fallthru
        _
      %p257 = scmp.le.s32.totalorder 1, %s11
      %p258 = scmp.lt.s32.totalorder %s11, 5
      %p259 = pnand %p257, %p258
      %p260 = pneg %p259
      // Predicated region
      $region59: #{tpu_custom_call.1} parent=5 // pred_check
        _
      $region60: #{tpu_custom_call.1} parent=5 // pred_check_branch
        %262 = sbr.rel (%p259) target = $region62
      $region61: #{tpu_custom_call.1} parent=5 // pred_region
        %s263 = ssub.s32 %s11, 1
        %s264 = sand.u32 %s38, 1
        %s265 = sand.u32 %s38, 1
        %s266 = smul.addr %s265, 56
        %s267 = scalar_lea.vmem [#allocation3], %s266
        // Predicated region
        $region63: #{tpu_custom_call.1} parent=61 // pred_check
          %p268 = pneg %p51
        $region64: #{tpu_custom_call.1} parent=61 // pred_check_branch
          %270 = sbr.rel (%p268) target = $region66
        $region65: #{tpu_custom_call.1} parent=61 // pred_region
          _
        $region66: #{tpu_custom_call.1} parent=61 // pred_fallthru
          _
        %s271 = sand.u32 %s38, 1
        %s272 = sand.u32 %s38, 1
        %s273 = smul.addr %s272, 56
        %s274 = scalar_lea.vmem [#allocation3], %s273
        %p275 = pneg %p51
        %p276 = pneg %p48
        %s277 = smul.u32 112, %s21
        %p278 = scmp.lt.s32.totalorder %s277, 447
        %s279 = scalar_select %p278, %s277, 447
        %s280 = smul.addr %s279, 3
        %s281 = smul.addr %s280, 4
        %s282 = scalar_lea.vmem %s1, %s281
        %p283 = pneg %p77
        %p284 = pneg %p74
        %p285 = pneg %p98
        %p286 = pneg %p95
        %p287 = pneg %p119
        %p288 = pneg %p116
        %p289 = pneg %p140
        %p290 = pneg %p137
        %p291 = pneg %p166
        %p292 = pneg %p163
        %s293 = smul.u32 2, %s20
        %p294 = scmp.lt.s32.totalorder %s293, 1
        %s295 = scalar_select %p294, %s293, 1
        %s296 = smul.addr %s295, 8
        %s297 = scalar_lea.vmem %s5, %s296
        %s298 = smul.u32 2, %s20
        %s299 = smul.u32 7, %s21
        %s300 = smul.u32 112, %s21
        %p301 = scmp.lt.s32.totalorder %s300, 447
        %s302 = scalar_select %p301, %s300, 447
        %s303 = smul.addr %s302, 3
        %s304 = smul.addr %s303, 4
        %s305 = scalar_lea.vmem %s1, %s304
        %s306 = smul.u32 112, %s21
        %s307 = smul.u32 2, %s20
        %p308 = scmp.lt.s32.totalorder %s307, 1
        %s309 = scalar_select %p308, %s307, 1
        %s310 = smul.addr %s309, 8
        %s311 = scalar_lea.vmem %s5, %s310
        %s312 = smul.u32 2, %s20
        %p314 = scmp.eq.s32.totalorder %s21, 0
        // Predicated region
        $region67: #{tpu_custom_call.1} parent=61 // pred_check
          %p315 = pneg %p314
        $region68: #{tpu_custom_call.1} parent=61 // pred_check_branch
          %317 = sbr.rel (%p315) target = $region70
        $region69: #{tpu_custom_call.1} parent=61 // pred_region
          %318 = vst [vmem:[#allocation2] sm:$0xff] 0.0
          %319 = vst [vmem:[#allocation2 + $0x8] sm:$0xff] 0.0
          %vm320 = vcmask 121856
          %321 = vst.msk [vmem:[#allocation2 + $0x10] sm:$0xff] %vm320, 0.0
          %322 = vst [vmem:[#allocation2 + $0x18] sm:$0xff] 0.0
          %323 = vst [vmem:[#allocation2 + $0x20] sm:$0xff] 0.0
          %324 = vst.msk [vmem:[#allocation2 + $0x28] sm:$0xff] %vm320, 0.0
        $region70: #{tpu_custom_call.1} parent=61 // pred_fallthru
          _
        %v325 = vld [vmem:[#allocation2] sm:$0xff]
        %v326 = vld [vmem:[#allocation2 + $0x8] sm:$0xff]
        %v327 = vld [vmem:[#allocation2 + $0x10] sm:$0xff]
        %v328 = vld [vmem:[#allocation2 + $0x18] sm:$0xff]
        %v329 = vld [vmem:[#allocation2 + $0x20] sm:$0xff]
        %v330 = vld [vmem:[#allocation2 + $0x28] sm:$0xff]
        %v331 = vld [vmem:[%s267] sm:$0xff]
        %v332 = vld [vmem:[%s267 + $0x8] sm:$0xff]
        %v333 = vld [vmem:[%s267 + $0x10] sm:$0xff]
        %v334 = vld [vmem:[%s267 + $0x18] sm:$0xf]
        %v335 = vld [vmem:[%s267 + $0x1c] sm:$0xff]
        %v336 = vld [vmem:[%s267 + $0x24] sm:$0xff]
        %v337 = vld [vmem:[%s267 + $0x2c] sm:$0xff]
        %v338 = vld [vmem:[%s267 + $0x34] sm:$0xf]
        %v339 = vld [vmem:[%s305] sm:$0xff]
        %v340 = vld [vmem:[%s305 + $0x8] sm:$0xf]
        %v341 = vld [vmem:[%s305 + $0xc] sm:$0xff]
        %v342 = vld [vmem:[%s305 + $0x14] sm:$0xf]
        %v343 = vld [vmem:[%s305 + $0x18] sm:$0xff]
        %v344 = vld [vmem:[%s305 + $0x20] sm:$0xf]
        %v345 = vld [vmem:[%s305 + $0x24] sm:$0xff]
        %v346 = vld [vmem:[%s305 + $0x2c] sm:$0xf]
        %v347 = vld [vmem:[%s305 + $0x30] sm:$0xff]
        %v348 = vld [vmem:[%s305 + $0x38] sm:$0xf]
        %v349 = vld [vmem:[%s305 + $0x3c] sm:$0xff]
        %v350 = vld [vmem:[%s305 + $0x44] sm:$0xf]
        %v351 = vld [vmem:[%s305 + $0x48] sm:$0xff]
        %v352 = vld [vmem:[%s305 + $0x50] sm:$0xf]
        %v353 = vld [vmem:[%s305 + $0x54] sm:$0xff]
        %v354 = vld [vmem:[%s305 + $0x5c] sm:$0xf]
        %v355 = vld [vmem:[%s305 + $0x60] sm:$0xff]
        %v356 = vld [vmem:[%s305 + $0x68] sm:$0xf]
        %v357 = vld [vmem:[%s305 + $0x6c] sm:$0xff]
        %v358 = vld [vmem:[%s305 + $0x74] sm:$0xf]
        %v359 = vld [vmem:[%s305 + $0x78] sm:$0xff]
        %v360 = vld [vmem:[%s305 + $0x80] sm:$0xf]
        %v361 = vld [vmem:[%s305 + $0x84] sm:$0xff]
        %v362 = vld [vmem:[%s305 + $0x8c] sm:$0xf]
        %v363 = vld [vmem:[%s305 + $0x90] sm:$0xff]
        %v364 = vld [vmem:[%s305 + $0x98] sm:$0xf]
        %v365 = vld [vmem:[%s305 + $0x9c] sm:$0xff]
        %v366 = vld [vmem:[%s305 + $0xa4] sm:$0xf]
        %v367 = vld [vmem:[%s305 + $0xa8] sm:$0xff]
        %v368 = vld [vmem:[%s305 + $0xb0] sm:$0xf]
        %v369 = vld [vmem:[%s305 + $0xb4] sm:$0xff]
        %v370 = vld [vmem:[%s305 + $0xbc] sm:$0xf]
        %v371 = vld [vmem:[%s305 + $0xc0] sm:$0xff]
        %v372 = vld [vmem:[%s305 + $0xc8] sm:$0xf]
        %v373 = vld [vmem:[%s305 + $0xcc] sm:$0xff]
        %v374 = vld [vmem:[%s305 + $0xd4] sm:$0xf]
        %v375 = vld [vmem:[%s305 + $0xd8] sm:$0xff]
        %v376 = vld [vmem:[%s305 + $0xe0] sm:$0xf]
        %v377 = vld [vmem:[%s305 + $0xe4] sm:$0xff]
        %v378 = vld [vmem:[%s305 + $0xec] sm:$0xf]
        %v379 = vld [vmem:[%s305 + $0xf0] sm:$0xff]
        %v380 = vld [vmem:[%s305 + $0xf8] sm:$0xf]
        %v381 = vld [vmem:[%s305 + $0xfc] sm:$0xff]
        %v382 = vld [vmem:[%s305 + $0x104] sm:$0xf]
        %v383 = vld [vmem:[%s305 + $0x108] sm:$0xff]
        %v384 = vld [vmem:[%s305 + $0x110] sm:$0xf]
        %v385 = vld [vmem:[%s305 + $0x114] sm:$0xff]
        %v386 = vld [vmem:[%s305 + $0x11c] sm:$0xf]
        %v387 = vld [vmem:[%s305 + $0x120] sm:$0xff]
        %v388 = vld [vmem:[%s305 + $0x128] sm:$0xf]
        %v389 = vld [vmem:[%s305 + $0x12c] sm:$0xff]
        %v390 = vld [vmem:[%s305 + $0x134] sm:$0xf]
        %v391 = vld [vmem:[%s305 + $0x138] sm:$0xff]
        %v392 = vld [vmem:[%s305 + $0x140] sm:$0xf]
        %v393 = vld [vmem:[%s305 + $0x144] sm:$0xff]
        %v394 = vld [vmem:[%s305 + $0x14c] sm:$0xf]
        %v395 = vld [vmem:[%s305 + $0x150] sm:$0xff]
        %v396 = vld [vmem:[%s305 + $0x158] sm:$0xf]
        %v397 = vld [vmem:[%s305 + $0x15c] sm:$0xff]
        %v398 = vld [vmem:[%s305 + $0x164] sm:$0xf]
        %v399 = vld [vmem:[%s305 + $0x168] sm:$0xff]
        %v400 = vld [vmem:[%s305 + $0x170] sm:$0xf]
        %v401 = vld [vmem:[%s305 + $0x174] sm:$0xff]
        %v402 = vld [vmem:[%s305 + $0x17c] sm:$0xf]
        %v403 = vld [vmem:[%s305 + $0x180] sm:$0xff]
        %v404 = vld [vmem:[%s305 + $0x188] sm:$0xf]
        %v405 = vld [vmem:[%s305 + $0x18c] sm:$0xff]
        %v406 = vld [vmem:[%s305 + $0x194] sm:$0xf]
        %v407 = vld [vmem:[%s305 + $0x198] sm:$0xff]
        %v408 = vld [vmem:[%s305 + $0x1a0] sm:$0xf]
        %v409 = vld [vmem:[%s305 + $0x1a4] sm:$0xff]
        %v410 = vld [vmem:[%s305 + $0x1ac] sm:$0xf]
        %v411 = vld [vmem:[%s305 + $0x1b0] sm:$0xff]
        %v412 = vld [vmem:[%s305 + $0x1b8] sm:$0xf]
        %v413 = vld [vmem:[%s305 + $0x1bc] sm:$0xff]
        %v414 = vld [vmem:[%s305 + $0x1c4] sm:$0xf]
        %v415 = vld [vmem:[%s305 + $0x1c8] sm:$0xff]
        %v416 = vld [vmem:[%s305 + $0x1d0] sm:$0xf]
        %v417 = vld [vmem:[%s305 + $0x1d4] sm:$0xff]
        %v418 = vld [vmem:[%s305 + $0x1dc] sm:$0xf]
        %v419 = vld [vmem:[%s305 + $0x1e0] sm:$0xff]
        %v420 = vld [vmem:[%s305 + $0x1e8] sm:$0xf]
        %v421 = vld [vmem:[%s305 + $0x1ec] sm:$0xff]
        %v422 = vld [vmem:[%s305 + $0x1f4] sm:$0xf]
        %v423 = vld [vmem:[%s305 + $0x1f8] sm:$0xff]
        %v424 = vld [vmem:[%s305 + $0x200] sm:$0xf]
        %v425 = vld [vmem:[%s305 + $0x204] sm:$0xff]
        %v426 = vld [vmem:[%s305 + $0x20c] sm:$0xf]
        %v427 = vld [vmem:[%s305 + $0x210] sm:$0xff]
        %v428 = vld [vmem:[%s305 + $0x218] sm:$0xf]
        %v429 = vld [vmem:[%s305 + $0x21c] sm:$0xff]
        %v430 = vld [vmem:[%s305 + $0x224] sm:$0xf]
        %v431 = vld [vmem:[%s305 + $0x228] sm:$0xff]
        %v432 = vld [vmem:[%s305 + $0x230] sm:$0xf]
        %v433 = vld [vmem:[%s305 + $0x234] sm:$0xff]
        %v434 = vld [vmem:[%s305 + $0x23c] sm:$0xf]
        %v435 = vld [vmem:[%s305 + $0x240] sm:$0xff]
        %v436 = vld [vmem:[%s305 + $0x248] sm:$0xf]
        %v437 = vld [vmem:[%s305 + $0x24c] sm:$0xff]
        %v438 = vld [vmem:[%s305 + $0x254] sm:$0xf]
        %v439 = vld [vmem:[%s305 + $0x258] sm:$0xff]
        %v440 = vld [vmem:[%s305 + $0x260] sm:$0xf]
        %v441 = vld [vmem:[%s305 + $0x264] sm:$0xff]
        %v442 = vld [vmem:[%s305 + $0x26c] sm:$0xf]
        %v443 = vld [vmem:[%s305 + $0x270] sm:$0xff]
        %v444 = vld [vmem:[%s305 + $0x278] sm:$0xf]
        %v445 = vld [vmem:[%s305 + $0x27c] sm:$0xff]
        %v446 = vld [vmem:[%s305 + $0x284] sm:$0xf]
        %v447 = vld [vmem:[%s305 + $0x288] sm:$0xff]
        %v448 = vld [vmem:[%s305 + $0x290] sm:$0xf]
        %v449 = vld [vmem:[%s305 + $0x294] sm:$0xff]
        %v450 = vld [vmem:[%s305 + $0x29c] sm:$0xf]
        %v451 = vld [vmem:[%s305 + $0x2a0] sm:$0xff]
        %v452 = vld [vmem:[%s305 + $0x2a8] sm:$0xf]
        %v453 = vld [vmem:[%s305 + $0x2ac] sm:$0xff]
        %v454 = vld [vmem:[%s305 + $0x2b4] sm:$0xf]
        %v455 = vld [vmem:[%s305 + $0x2b8] sm:$0xff]
        %v456 = vld [vmem:[%s305 + $0x2c0] sm:$0xf]
        %v457 = vld [vmem:[%s305 + $0x2c4] sm:$0xff]
        %v458 = vld [vmem:[%s305 + $0x2cc] sm:$0xf]
        %v459 = vld [vmem:[%s305 + $0x2d0] sm:$0xff]
        %v460 = vld [vmem:[%s305 + $0x2d8] sm:$0xf]
        %v461 = vld [vmem:[%s305 + $0x2dc] sm:$0xff]
        %v462 = vld [vmem:[%s305 + $0x2e4] sm:$0xf]
        %v463 = vld [vmem:[%s305 + $0x2e8] sm:$0xff]
        %v464 = vld [vmem:[%s305 + $0x2f0] sm:$0xf]
        %v465 = vld [vmem:[%s305 + $0x2f4] sm:$0xff]
        %v466 = vld [vmem:[%s305 + $0x2fc] sm:$0xf]
        %v467 = vld [vmem:[%s305 + $0x300] sm:$0xff]
        %v468 = vld [vmem:[%s305 + $0x308] sm:$0xf]
        %v469 = vld [vmem:[%s305 + $0x30c] sm:$0xff]
        %v470 = vld [vmem:[%s305 + $0x314] sm:$0xf]
        %v471 = vld [vmem:[%s305 + $0x318] sm:$0xff]
        %v472 = vld [vmem:[%s305 + $0x320] sm:$0xf]
        %v473 = vld [vmem:[%s305 + $0x324] sm:$0xff]
        %v474 = vld [vmem:[%s305 + $0x32c] sm:$0xf]
        %v475 = vld [vmem:[%s305 + $0x330] sm:$0xff]
        %v476 = vld [vmem:[%s305 + $0x338] sm:$0xf]
        %v477 = vld [vmem:[%s305 + $0x33c] sm:$0xff]
        %v478 = vld [vmem:[%s305 + $0x344] sm:$0xf]
        %v479 = vld [vmem:[%s305 + $0x348] sm:$0xff]
        %v480 = vld [vmem:[%s305 + $0x350] sm:$0xf]
        %v481 = vld [vmem:[%s305 + $0x354] sm:$0xff]
        %v482 = vld [vmem:[%s305 + $0x35c] sm:$0xf]
        %v483 = vld [vmem:[%s305 + $0x360] sm:$0xff]
        %v484 = vld [vmem:[%s305 + $0x368] sm:$0xf]
        %v485 = vld [vmem:[%s305 + $0x36c] sm:$0xff]
        %v486 = vld [vmem:[%s305 + $0x374] sm:$0xf]
        %v487 = vld [vmem:[%s305 + $0x378] sm:$0xff]
        %v488 = vld [vmem:[%s305 + $0x380] sm:$0xf]
        %v489 = vld [vmem:[%s305 + $0x384] sm:$0xff]
        %v490 = vld [vmem:[%s305 + $0x38c] sm:$0xf]
        %v491 = vld [vmem:[%s305 + $0x390] sm:$0xff]
        %v492 = vld [vmem:[%s305 + $0x398] sm:$0xf]
        %v493 = vld [vmem:[%s305 + $0x39c] sm:$0xff]
        %v494 = vld [vmem:[%s305 + $0x3a4] sm:$0xf]
        %v495 = vld [vmem:[%s305 + $0x3a8] sm:$0xff]
        %v496 = vld [vmem:[%s305 + $0x3b0] sm:$0xf]
        %v497 = vld [vmem:[%s305 + $0x3b4] sm:$0xff]
        %v498 = vld [vmem:[%s305 + $0x3bc] sm:$0xf]
        %v499 = vld [vmem:[%s305 + $0x3c0] sm:$0xff]
        %v500 = vld [vmem:[%s305 + $0x3c8] sm:$0xf]
        %v501 = vld [vmem:[%s305 + $0x3cc] sm:$0xff]
        %v502 = vld [vmem:[%s305 + $0x3d4] sm:$0xf]
        %v503 = vld [vmem:[%s305 + $0x3d8] sm:$0xff]
        %v504 = vld [vmem:[%s305 + $0x3e0] sm:$0xf]
        %v505 = vld [vmem:[%s305 + $0x3e4] sm:$0xff]
        %v506 = vld [vmem:[%s305 + $0x3ec] sm:$0xf]
        %v507 = vld [vmem:[%s305 + $0x3f0] sm:$0xff]
        %v508 = vld [vmem:[%s305 + $0x3f8] sm:$0xf]
        %v509 = vld [vmem:[%s305 + $0x3fc] sm:$0xff]
        %v510 = vld [vmem:[%s305 + $0x404] sm:$0xf]
        %v511 = vld [vmem:[%s305 + $0x408] sm:$0xff]
        %v512 = vld [vmem:[%s305 + $0x410] sm:$0xf]
        %v513 = vld [vmem:[%s305 + $0x414] sm:$0xff]
        %v514 = vld [vmem:[%s305 + $0x41c] sm:$0xf]
        %v515 = vld [vmem:[%s305 + $0x420] sm:$0xff]
        %v516 = vld [vmem:[%s305 + $0x428] sm:$0xf]
        %v517 = vld [vmem:[%s305 + $0x42c] sm:$0xff]
        %v518 = vld [vmem:[%s305 + $0x434] sm:$0xf]
        %v519 = vld [vmem:[%s305 + $0x438] sm:$0xff]
        %v520 = vld [vmem:[%s305 + $0x440] sm:$0xf]
        %v521 = vld [vmem:[%s305 + $0x444] sm:$0xff]
        %v522 = vld [vmem:[%s305 + $0x44c] sm:$0xf]
        %v523 = vld [vmem:[%s305 + $0x450] sm:$0xff]
        %v524 = vld [vmem:[%s305 + $0x458] sm:$0xf]
        %v525 = vld [vmem:[%s305 + $0x45c] sm:$0xff]
        %v526 = vld [vmem:[%s305 + $0x464] sm:$0xf]
        %v527 = vld [vmem:[%s305 + $0x468] sm:$0xff]
        %v528 = vld [vmem:[%s305 + $0x470] sm:$0xf]
        %v529 = vld [vmem:[%s305 + $0x474] sm:$0xff]
        %v530 = vld [vmem:[%s305 + $0x47c] sm:$0xf]
        %v531 = vld [vmem:[%s305 + $0x480] sm:$0xff]
        %v532 = vld [vmem:[%s305 + $0x488] sm:$0xf]
        %v533 = vld [vmem:[%s305 + $0x48c] sm:$0xff]
        %v534 = vld [vmem:[%s305 + $0x494] sm:$0xf]
        %v535 = vld [vmem:[%s305 + $0x498] sm:$0xff]
        %v536 = vld [vmem:[%s305 + $0x4a0] sm:$0xf]
        %v537 = vld [vmem:[%s305 + $0x4a4] sm:$0xff]
        %v538 = vld [vmem:[%s305 + $0x4ac] sm:$0xf]
        %v539 = vld [vmem:[%s305 + $0x4b0] sm:$0xff]
        %v540 = vld [vmem:[%s305 + $0x4b8] sm:$0xf]
        %v541 = vld [vmem:[%s305 + $0x4bc] sm:$0xff]
        %v542 = vld [vmem:[%s305 + $0x4c4] sm:$0xf]
        %v543 = vld [vmem:[%s305 + $0x4c8] sm:$0xff]
        %v544 = vld [vmem:[%s305 + $0x4d0] sm:$0xf]
        %v545 = vld [vmem:[%s305 + $0x4d4] sm:$0xff]
        %v546 = vld [vmem:[%s305 + $0x4dc] sm:$0xf]
        %v547 = vld [vmem:[%s305 + $0x4e0] sm:$0xff]
        %v548 = vld [vmem:[%s305 + $0x4e8] sm:$0xf]
        %v549 = vld [vmem:[%s305 + $0x4ec] sm:$0xff]
        %v550 = vld [vmem:[%s305 + $0x4f4] sm:$0xf]
        %v551 = vld [vmem:[%s305 + $0x4f8] sm:$0xff]
        %v552 = vld [vmem:[%s305 + $0x500] sm:$0xf]
        %v553 = vld [vmem:[%s305 + $0x504] sm:$0xff]
        %v554 = vld [vmem:[%s305 + $0x50c] sm:$0xf]
        %v555 = vld [vmem:[%s305 + $0x510] sm:$0xff]
        %v556 = vld [vmem:[%s305 + $0x518] sm:$0xf]
        %v557 = vld [vmem:[%s305 + $0x51c] sm:$0xff]
        %v558 = vld [vmem:[%s305 + $0x524] sm:$0xf]
        %v559 = vld [vmem:[%s305 + $0x528] sm:$0xff]
        %v560 = vld [vmem:[%s305 + $0x530] sm:$0xf]
        %v561 = vld [vmem:[%s305 + $0x534] sm:$0xff]
        %v562 = vld [vmem:[%s305 + $0x53c] sm:$0xf]
        %v571 = vunpack.c.l.b16 %v331
        %v572 = vunpack.c.h.b16 %v331
        %v573 = vunpack.c.l.b16 %v332
        %v574 = vunpack.c.h.b16 %v332
        %v575 = vunpack.c.l.b16 %v333
        %v576 = vunpack.c.h.b16 %v333
        %v577 = vunpack.c.l.b16 %v334
        %v578 = vunpack.c.l.b16 %v335
        %v579 = vunpack.c.h.b16 %v335
        %v580 = vunpack.c.l.b16 %v336
        %v581 = vunpack.c.h.b16 %v336
        %v582 = vunpack.c.l.b16 %v337
        %v583 = vunpack.c.h.b16 %v337
        %v584 = vunpack.c.l.b16 %v338
        %v585 = vpack.c.b16 %v578, %v571
        %v586 = vpack.c.b16 %v579, %v572
        %v587 = vpack.c.b16 %v580, %v573
        %v588 = vpack.c.b16 %v581, %v574
        %v589 = vpack.c.b16 %v582, %v575
        %v590 = vpack.c.b16 %v583, %v576
        %v591 = vpack.c.b16 %v584, %v577
        %v823 = vunpack.c.l.b16 %v339
        %v824 = vunpack.c.h.b16 %v339
        %v825 = vunpack.c.l.b16 %v340
        %v826 = vunpack.c.l.b16 %v341
        %v827 = vunpack.c.h.b16 %v341
        %v828 = vunpack.c.l.b16 %v342
        %v829 = vunpack.c.l.b16 %v343
        %v830 = vunpack.c.h.b16 %v343
        %v831 = vunpack.c.l.b16 %v344
        %v832 = vunpack.c.l.b16 %v345
        %v833 = vunpack.c.h.b16 %v345
        %v834 = vunpack.c.l.b16 %v346
        %v835 = vunpack.c.l.b16 %v347
        %v836 = vunpack.c.h.b16 %v347
        %v837 = vunpack.c.l.b16 %v348
        %v838 = vunpack.c.l.b16 %v349
        %v839 = vunpack.c.h.b16 %v349
        %v840 = vunpack.c.l.b16 %v350
        %v841 = vunpack.c.l.b16 %v351
        %v842 = vunpack.c.h.b16 %v351
        %v843 = vunpack.c.l.b16 %v352
        %v844 = vunpack.c.l.b16 %v353
        %v845 = vunpack.c.h.b16 %v353
        %v846 = vunpack.c.l.b16 %v354
        %v847 = vunpack.c.l.b16 %v355
        %v848 = vunpack.c.h.b16 %v355
        %v849 = vunpack.c.l.b16 %v356
        %v850 = vunpack.c.l.b16 %v357
        %v851 = vunpack.c.h.b16 %v357
        %v852 = vunpack.c.l.b16 %v358
        %v853 = vunpack.c.l.b16 %v359
        %v854 = vunpack.c.h.b16 %v359
        %v855 = vunpack.c.l.b16 %v360
        %v856 = vunpack.c.l.b16 %v361
        %v857 = vunpack.c.h.b16 %v361
        %v858 = vunpack.c.l.b16 %v362
        %v859 = vunpack.c.l.b16 %v363
        %v860 = vunpack.c.h.b16 %v363
        %v861 = vunpack.c.l.b16 %v364
        %v862 = vunpack.c.l.b16 %v365
        %v863 = vunpack.c.h.b16 %v365
        %v864 = vunpack.c.l.b16 %v366
        %v865 = vunpack.c.l.b16 %v367
        %v866 = vunpack.c.h.b16 %v367
        %v867 = vunpack.c.l.b16 %v368
        %v868 = vunpack.c.l.b16 %v369
        %v869 = vunpack.c.h.b16 %v369
        %v870 = vunpack.c.l.b16 %v370
        %v871 = vunpack.c.l.b16 %v371
        %v872 = vunpack.c.h.b16 %v371
        %v873 = vunpack.c.l.b16 %v372
        %v874 = vunpack.c.l.b16 %v373
        %v875 = vunpack.c.h.b16 %v373
        %v876 = vunpack.c.l.b16 %v374
        %v877 = vunpack.c.l.b16 %v375
        %v878 = vunpack.c.h.b16 %v375
        %v879 = vunpack.c.l.b16 %v376
        %v880 = vunpack.c.l.b16 %v377
        %v881 = vunpack.c.h.b16 %v377
        %v882 = vunpack.c.l.b16 %v378
        %v883 = vunpack.c.l.b16 %v379
        %v884 = vunpack.c.h.b16 %v379
        %v885 = vunpack.c.l.b16 %v380
        %v886 = vunpack.c.l.b16 %v381
        %v887 = vunpack.c.h.b16 %v381
        %v888 = vunpack.c.l.b16 %v382
        %v889 = vunpack.c.l.b16 %v383
        %v890 = vunpack.c.h.b16 %v383
        %v891 = vunpack.c.l.b16 %v384
        %v892 = vunpack.c.l.b16 %v385
        %v893 = vunpack.c.h.b16 %v385
        %v894 = vunpack.c.l.b16 %v386
        %v895 = vunpack.c.l.b16 %v387
        %v896 = vunpack.c.h.b16 %v387
        %v897 = vunpack.c.l.b16 %v388
        %v898 = vunpack.c.l.b16 %v389
        %v899 = vunpack.c.h.b16 %v389
        %v900 = vunpack.c.l.b16 %v390
        %v901 = vunpack.c.l.b16 %v391
        %v902 = vunpack.c.h.b16 %v391
        %v903 = vunpack.c.l.b16 %v392
        %v904 = vunpack.c.l.b16 %v393
        %v905 = vunpack.c.h.b16 %v393
        %v906 = vunpack.c.l.b16 %v394
        %v907 = vunpack.c.l.b16 %v395
        %v908 = vunpack.c.h.b16 %v395
        %v909 = vunpack.c.l.b16 %v396
        %v910 = vunpack.c.l.b16 %v397
        %v911 = vunpack.c.h.b16 %v397
        %v912 = vunpack.c.l.b16 %v398
        %v913 = vunpack.c.l.b16 %v399
        %v914 = vunpack.c.h.b16 %v399
        %v915 = vunpack.c.l.b16 %v400
        %v916 = vunpack.c.l.b16 %v401
        %v917 = vunpack.c.h.b16 %v401
        %v918 = vunpack.c.l.b16 %v402
        %v919 = vunpack.c.l.b16 %v403
        %v920 = vunpack.c.h.b16 %v403
        %v921 = vunpack.c.l.b16 %v404
        %v922 = vunpack.c.l.b16 %v405
        %v923 = vunpack.c.h.b16 %v405
        %v924 = vunpack.c.l.b16 %v406
        %v925 = vunpack.c.l.b16 %v407
        %v926 = vunpack.c.h.b16 %v407
        %v927 = vunpack.c.l.b16 %v408
        %v928 = vunpack.c.l.b16 %v409
        %v929 = vunpack.c.h.b16 %v409
        %v930 = vunpack.c.l.b16 %v410
        %v931 = vunpack.c.l.b16 %v411
        %v932 = vunpack.c.h.b16 %v411
        %v933 = vunpack.c.l.b16 %v412
        %v934 = vunpack.c.l.b16 %v413
        %v935 = vunpack.c.h.b16 %v413
        %v936 = vunpack.c.l.b16 %v414
        %v937 = vunpack.c.l.b16 %v415
        %v938 = vunpack.c.h.b16 %v415
        %v939 = vunpack.c.l.b16 %v416
        %v940 = vunpack.c.l.b16 %v417
        %v941 = vunpack.c.h.b16 %v417
        %v942 = vunpack.c.l.b16 %v418
        %v943 = vunpack.c.l.b16 %v419
        %v944 = vunpack.c.h.b16 %v419
        %v945 = vunpack.c.l.b16 %v420
        %v946 = vunpack.c.l.b16 %v421
        %v947 = vunpack.c.h.b16 %v421
        %v948 = vunpack.c.l.b16 %v422
        %v949 = vunpack.c.l.b16 %v423
        %v950 = vunpack.c.h.b16 %v423
        %v951 = vunpack.c.l.b16 %v424
        %v952 = vunpack.c.l.b16 %v425
        %v953 = vunpack.c.h.b16 %v425
        %v954 = vunpack.c.l.b16 %v426
        %v955 = vunpack.c.l.b16 %v427
        %v956 = vunpack.c.h.b16 %v427
        %v957 = vunpack.c.l.b16 %v428
        %v958 = vunpack.c.l.b16 %v429
        %v959 = vunpack.c.h.b16 %v429
        %v960 = vunpack.c.l.b16 %v430
        %v961 = vunpack.c.l.b16 %v431
        %v962 = vunpack.c.h.b16 %v431
        %v963 = vunpack.c.l.b16 %v432
        %v964 = vunpack.c.l.b16 %v433
        %v965 = vunpack.c.h.b16 %v433
        %v966 = vunpack.c.l.b16 %v434
        %v967 = vunpack.c.l.b16 %v435
        %v968 = vunpack.c.h.b16 %v435
        %v969 = vunpack.c.l.b16 %v436
        %v970 = vunpack.c.l.b16 %v437
        %v971 = vunpack.c.h.b16 %v437
        %v972 = vunpack.c.l.b16 %v438
        %v973 = vunpack.c.l.b16 %v439
        %v974 = vunpack.c.h.b16 %v439
        %v975 = vunpack.c.l.b16 %v440
        %v976 = vunpack.c.l.b16 %v441
        %v977 = vunpack.c.h.b16 %v441
        %v978 = vunpack.c.l.b16 %v442
        %v979 = vunpack.c.l.b16 %v443
        %v980 = vunpack.c.h.b16 %v443
        %v981 = vunpack.c.l.b16 %v444
        %v982 = vunpack.c.l.b16 %v445
        %v983 = vunpack.c.h.b16 %v445
        %v984 = vunpack.c.l.b16 %v446
        %v985 = vunpack.c.l.b16 %v447
        %v986 = vunpack.c.h.b16 %v447
        %v987 = vunpack.c.l.b16 %v448
        %v988 = vunpack.c.l.b16 %v449
        %v989 = vunpack.c.h.b16 %v449
        %v990 = vunpack.c.l.b16 %v450
        %v991 = vunpack.c.l.b16 %v451
        %v992 = vunpack.c.h.b16 %v451
        %v993 = vunpack.c.l.b16 %v452
        %v994 = vunpack.c.l.b16 %v453
        %v995 = vunpack.c.h.b16 %v453
        %v996 = vunpack.c.l.b16 %v454
        %v997 = vunpack.c.l.b16 %v455
        %v998 = vunpack.c.h.b16 %v455
        %v999 = vunpack.c.l.b16 %v456
        %v1000 = vunpack.c.l.b16 %v457
        %v1001 = vunpack.c.h.b16 %v457
        %v1002 = vunpack.c.l.b16 %v458
        %v1003 = vunpack.c.l.b16 %v459
        %v1004 = vunpack.c.h.b16 %v459
        %v1005 = vunpack.c.l.b16 %v460
        %v1006 = vunpack.c.l.b16 %v461
        %v1007 = vunpack.c.h.b16 %v461
        %v1008 = vunpack.c.l.b16 %v462
        %v1009 = vunpack.c.l.b16 %v463
        %v1010 = vunpack.c.h.b16 %v463
        %v1011 = vunpack.c.l.b16 %v464
        %v1012 = vunpack.c.l.b16 %v465
        %v1013 = vunpack.c.h.b16 %v465
        %v1014 = vunpack.c.l.b16 %v466
        %v1015 = vunpack.c.l.b16 %v467
        %v1016 = vunpack.c.h.b16 %v467
        %v1017 = vunpack.c.l.b16 %v468
        %v1018 = vunpack.c.l.b16 %v469
        %v1019 = vunpack.c.h.b16 %v469
        %v1020 = vunpack.c.l.b16 %v470
        %v1021 = vunpack.c.l.b16 %v471
        %v1022 = vunpack.c.h.b16 %v471
        %v1023 = vunpack.c.l.b16 %v472
        %v1024 = vunpack.c.l.b16 %v473
        %v1025 = vunpack.c.h.b16 %v473
        %v1026 = vunpack.c.l.b16 %v474
        %v1027 = vunpack.c.l.b16 %v475
        %v1028 = vunpack.c.h.b16 %v475
        %v1029 = vunpack.c.l.b16 %v476
        %v1030 = vunpack.c.l.b16 %v477
        %v1031 = vunpack.c.h.b16 %v477
        %v1032 = vunpack.c.l.b16 %v478
        %v1033 = vunpack.c.l.b16 %v479
        %v1034 = vunpack.c.h.b16 %v479
        %v1035 = vunpack.c.l.b16 %v480
        %v1036 = vunpack.c.l.b16 %v481
        %v1037 = vunpack.c.h.b16 %v481
        %v1038 = vunpack.c.l.b16 %v482
        %v1039 = vunpack.c.l.b16 %v483
        %v1040 = vunpack.c.h.b16 %v483
        %v1041 = vunpack.c.l.b16 %v484
        %v1042 = vunpack.c.l.b16 %v485
        %v1043 = vunpack.c.h.b16 %v485
        %v1044 = vunpack.c.l.b16 %v486
        %v1045 = vunpack.c.l.b16 %v487
        %v1046 = vunpack.c.h.b16 %v487
        %v1047 = vunpack.c.l.b16 %v488
        %v1048 = vunpack.c.l.b16 %v489
        %v1049 = vunpack.c.h.b16 %v489
        %v1050 = vunpack.c.l.b16 %v490
        %v1051 = vunpack.c.l.b16 %v491
        %v1052 = vunpack.c.h.b16 %v491
        %v1053 = vunpack.c.l.b16 %v492
        %v1054 = vunpack.c.l.b16 %v493
        %v1055 = vunpack.c.h.b16 %v493
        %v1056 = vunpack.c.l.b16 %v494
        %v1057 = vunpack.c.l.b16 %v495
        %v1058 = vunpack.c.h.b16 %v495
        %v1059 = vunpack.c.l.b16 %v496
        %v1060 = vunpack.c.l.b16 %v497
        %v1061 = vunpack.c.h.b16 %v497
        %v1062 = vunpack.c.l.b16 %v498
        %v1063 = vunpack.c.l.b16 %v499
        %v1064 = vunpack.c.h.b16 %v499
        %v1065 = vunpack.c.l.b16 %v500
        %v1066 = vunpack.c.l.b16 %v501
        %v1067 = vunpack.c.h.b16 %v501
        %v1068 = vunpack.c.l.b16 %v502
        %v1069 = vunpack.c.l.b16 %v503
        %v1070 = vunpack.c.h.b16 %v503
        %v1071 = vunpack.c.l.b16 %v504
        %v1072 = vunpack.c.l.b16 %v505
        %v1073 = vunpack.c.h.b16 %v505
        %v1074 = vunpack.c.l.b16 %v506
        %v1075 = vunpack.c.l.b16 %v507
        %v1076 = vunpack.c.h.b16 %v507
        %v1077 = vunpack.c.l.b16 %v508
        %v1078 = vunpack.c.l.b16 %v509
        %v1079 = vunpack.c.h.b16 %v509
        %v1080 = vunpack.c.l.b16 %v510
        %v1081 = vunpack.c.l.b16 %v511
        %v1082 = vunpack.c.h.b16 %v511
        %v1083 = vunpack.c.l.b16 %v512
        %v1084 = vunpack.c.l.b16 %v513
        %v1085 = vunpack.c.h.b16 %v513
        %v1086 = vunpack.c.l.b16 %v514
        %v1087 = vunpack.c.l.b16 %v515
        %v1088 = vunpack.c.h.b16 %v515
        %v1089 = vunpack.c.l.b16 %v516
        %v1090 = vunpack.c.l.b16 %v517
        %v1091 = vunpack.c.h.b16 %v517
        %v1092 = vunpack.c.l.b16 %v518
        %v1093 = vunpack.c.l.b16 %v519
        %v1094 = vunpack.c.h.b16 %v519
        %v1095 = vunpack.c.l.b16 %v520
        %v1096 = vunpack.c.l.b16 %v521
        %v1097 = vunpack.c.h.b16 %v521
        %v1098 = vunpack.c.l.b16 %v522
        %v1099 = vunpack.c.l.b16 %v523
        %v1100 = vunpack.c.h.b16 %v523
        %v1101 = vunpack.c.l.b16 %v524
        %v1102 = vunpack.c.l.b16 %v525
        %v1103 = vunpack.c.h.b16 %v525
        %v1104 = vunpack.c.l.b16 %v526
        %v1105 = vunpack.c.l.b16 %v527
        %v1106 = vunpack.c.h.b16 %v527
        %v1107 = vunpack.c.l.b16 %v528
        %v1108 = vunpack.c.l.b16 %v529
        %v1109 = vunpack.c.h.b16 %v529
        %v1110 = vunpack.c.l.b16 %v530
        %v1111 = vunpack.c.l.b16 %v531
        %v1112 = vunpack.c.h.b16 %v531
        %v1113 = vunpack.c.l.b16 %v532
        %v1114 = vunpack.c.l.b16 %v533
        %v1115 = vunpack.c.h.b16 %v533
        %v1116 = vunpack.c.l.b16 %v534
        %v1117 = vunpack.c.l.b16 %v535
        %v1118 = vunpack.c.h.b16 %v535
        %v1119 = vunpack.c.l.b16 %v536
        %v1120 = vunpack.c.l.b16 %v537
        %v1121 = vunpack.c.h.b16 %v537
        %v1122 = vunpack.c.l.b16 %v538
        %v1123 = vunpack.c.l.b16 %v539
        %v1124 = vunpack.c.h.b16 %v539
        %v1125 = vunpack.c.l.b16 %v540
        %v1126 = vunpack.c.l.b16 %v541
        %v1127 = vunpack.c.h.b16 %v541
        %v1128 = vunpack.c.l.b16 %v542
        %v1129 = vunpack.c.l.b16 %v543
        %v1130 = vunpack.c.h.b16 %v543
        %v1131 = vunpack.c.l.b16 %v544
        %v1132 = vunpack.c.l.b16 %v545
        %v1133 = vunpack.c.h.b16 %v545
        %v1134 = vunpack.c.l.b16 %v546
        %v1135 = vunpack.c.l.b16 %v547
        %v1136 = vunpack.c.h.b16 %v547
        %v1137 = vunpack.c.l.b16 %v548
        %v1138 = vunpack.c.l.b16 %v549
        %v1139 = vunpack.c.h.b16 %v549
        %v1140 = vunpack.c.l.b16 %v550
        %v1141 = vunpack.c.l.b16 %v551
        %v1142 = vunpack.c.h.b16 %v551
        %v1143 = vunpack.c.l.b16 %v552
        %v1144 = vunpack.c.l.b16 %v553
        %v1145 = vunpack.c.h.b16 %v553
        %v1146 = vunpack.c.l.b16 %v554
        %v1147 = vunpack.c.l.b16 %v555
        %v1148 = vunpack.c.h.b16 %v555
        %v1149 = vunpack.c.l.b16 %v556
        %v1150 = vunpack.c.l.b16 %v557
        %v1151 = vunpack.c.h.b16 %v557
        %v1152 = vunpack.c.l.b16 %v558
        %v1153 = vunpack.c.l.b16 %v559
        %v1154 = vunpack.c.h.b16 %v559
        %v1155 = vunpack.c.l.b16 %v560
        %v1156 = vunpack.c.l.b16 %v561
        %v1157 = vunpack.c.h.b16 %v561
        %v1158 = vunpack.c.l.b16 %v562
        %v1159 = vpack.c.b16 %v826, %v823
        %v1160 = vpack.c.b16 %v827, %v824
        %v1161 = vpack.c.b16 %v828, %v825
        %v1162 = vpack.c.b16 %v832, %v829
        %v1163 = vpack.c.b16 %v833, %v830
        %v1164 = vpack.c.b16 %v834, %v831
        %v1165 = vpack.c.b16 %v838, %v835
        %v1166 = vpack.c.b16 %v839, %v836
        %v1167 = vpack.c.b16 %v840, %v837
        %v1168 = vpack.c.b16 %v844, %v841
        %v1169 = vpack.c.b16 %v845, %v842
        %v1170 = vpack.c.b16 %v846, %v843
        %v1171 = vpack.c.b16 %v850, %v847
        %v1172 = vpack.c.b16 %v851, %v848
        %v1173 = vpack.c.b16 %v852, %v849
        %v1174 = vpack.c.b16 %v856, %v853
        %v1175 = vpack.c.b16 %v857, %v854
        %v1176 = vpack.c.b16 %v858, %v855
        %v1177 = vpack.c.b16 %v862, %v859
        %v1178 = vpack.c.b16 %v863, %v860
        %v1179 = vpack.c.b16 %v864, %v861
        %v1180 = vpack.c.b16 %v868, %v865
        %v1181 = vpack.c.b16 %v869, %v866
        %v1182 = vpack.c.b16 %v870, %v867
        %v1183 = vpack.c.b16 %v874, %v871
        %v1184 = vpack.c.b16 %v875, %v872
        %v1185 = vpack.c.b16 %v876, %v873
        %v1186 = vpack.c.b16 %v880, %v877
        %v1187 = vpack.c.b16 %v881, %v878
        %v1188 = vpack.c.b16 %v882, %v879
        %v1189 = vpack.c.b16 %v886, %v883
        %v1190 = vpack.c.b16 %v887, %v884
        %v1191 = vpack.c.b16 %v888, %v885
        %v1192 = vpack.c.b16 %v892, %v889
        %v1193 = vpack.c.b16 %v893, %v890
        %v1194 = vpack.c.b16 %v894, %v891
        %v1195 = vpack.c.b16 %v898, %v895
        %v1196 = vpack.c.b16 %v899, %v896
        %v1197 = vpack.c.b16 %v900, %v897
        %v1198 = vpack.c.b16 %v904, %v901
        %v1199 = vpack.c.b16 %v905, %v902
        %v1200 = vpack.c.b16 %v906, %v903
        %v1201 = vpack.c.b16 %v910, %v907
        %v1202 = vpack.c.b16 %v911, %v908
        %v1203 = vpack.c.b16 %v912, %v909
        %v1204 = vpack.c.b16 %v916, %v913
        %v1205 = vpack.c.b16 %v917, %v914
        %v1206 = vpack.c.b16 %v918, %v915
        %v1207 = vpack.c.b16 %v922, %v919
        %v1208 = vpack.c.b16 %v923, %v920
        %v1209 = vpack.c.b16 %v924, %v921
        %v1210 = vpack.c.b16 %v928, %v925
        %v1211 = vpack.c.b16 %v929, %v926
        %v1212 = vpack.c.b16 %v930, %v927
        %v1213 = vpack.c.b16 %v934, %v931
        %v1214 = vpack.c.b16 %v935, %v932
        %v1215 = vpack.c.b16 %v936, %v933
        %v1216 = vpack.c.b16 %v940, %v937
        %v1217 = vpack.c.b16 %v941, %v938
        %v1218 = vpack.c.b16 %v942, %v939
        %v1219 = vpack.c.b16 %v946, %v943
        %v1220 = vpack.c.b16 %v947, %v944
        %v1221 = vpack.c.b16 %v948, %v945
        %v1222 = vpack.c.b16 %v952, %v949
        %v1223 = vpack.c.b16 %v953, %v950
        %v1224 = vpack.c.b16 %v954, %v951
        %v1225 = vpack.c.b16 %v958, %v955
        %v1226 = vpack.c.b16 %v959, %v956
        %v1227 = vpack.c.b16 %v960, %v957
        %v1228 = vpack.c.b16 %v964, %v961
        %v1229 = vpack.c.b16 %v965, %v962
        %v1230 = vpack.c.b16 %v966, %v963
        %v1231 = vpack.c.b16 %v970, %v967
        %v1232 = vpack.c.b16 %v971, %v968
        %v1233 = vpack.c.b16 %v972, %v969
        %v1234 = vpack.c.b16 %v976, %v973
        %v1235 = vpack.c.b16 %v977, %v974
        %v1236 = vpack.c.b16 %v978, %v975
        %v1237 = vpack.c.b16 %v982, %v979
        %v1238 = vpack.c.b16 %v983, %v980
        %v1239 = vpack.c.b16 %v984, %v981
        %v1240 = vpack.c.b16 %v988, %v985
        %v1241 = vpack.c.b16 %v989, %v986
        %v1242 = vpack.c.b16 %v990, %v987
        %v1243 = vpack.c.b16 %v994, %v991
        %v1244 = vpack.c.b16 %v995, %v992
        %v1245 = vpack.c.b16 %v996, %v993
        %v1246 = vpack.c.b16 %v1000, %v997
        %v1247 = vpack.c.b16 %v1001, %v998
        %v1248 = vpack.c.b16 %v1002, %v999
        %v1249 = vpack.c.b16 %v1006, %v1003
        %v1250 = vpack.c.b16 %v1007, %v1004
        %v1251 = vpack.c.b16 %v1008, %v1005
        %v1252 = vpack.c.b16 %v1012, %v1009
        %v1253 = vpack.c.b16 %v1013, %v1010
        %v1254 = vpack.c.b16 %v1014, %v1011
        %v1255 = vpack.c.b16 %v1018, %v1015
        %v1256 = vpack.c.b16 %v1019, %v1016
        %v1257 = vpack.c.b16 %v1020, %v1017
        %v1258 = vpack.c.b16 %v1024, %v1021
        %v1259 = vpack.c.b16 %v1025, %v1022
        %v1260 = vpack.c.b16 %v1026, %v1023
        %v1261 = vpack.c.b16 %v1030, %v1027
        %v1262 = vpack.c.b16 %v1031, %v1028
        %v1263 = vpack.c.b16 %v1032, %v1029
        %v1264 = vpack.c.b16 %v1036, %v1033
        %v1265 = vpack.c.b16 %v1037, %v1034
        %v1266 = vpack.c.b16 %v1038, %v1035
        %v1267 = vpack.c.b16 %v1042, %v1039
        %v1268 = vpack.c.b16 %v1043, %v1040
        %v1269 = vpack.c.b16 %v1044, %v1041
        %v1270 = vpack.c.b16 %v1048, %v1045
        %v1271 = vpack.c.b16 %v1049, %v1046
        %v1272 = vpack.c.b16 %v1050, %v1047
        %v1273 = vpack.c.b16 %v1054, %v1051
        %v1274 = vpack.c.b16 %v1055, %v1052
        %v1275 = vpack.c.b16 %v1056, %v1053
        %v1276 = vpack.c.b16 %v1060, %v1057
        %v1277 = vpack.c.b16 %v1061, %v1058
        %v1278 = vpack.c.b16 %v1062, %v1059
        %v1279 = vpack.c.b16 %v1066, %v1063
        %v1280 = vpack.c.b16 %v1067, %v1064
        %v1281 = vpack.c.b16 %v1068, %v1065
        %v1282 = vpack.c.b16 %v1072, %v1069
        %v1283 = vpack.c.b16 %v1073, %v1070
        %v1284 = vpack.c.b16 %v1074, %v1071
        %v1285 = vpack.c.b16 %v1078, %v1075
        %v1286 = vpack.c.b16 %v1079, %v1076
        %v1287 = vpack.c.b16 %v1080, %v1077
        %v1288 = vpack.c.b16 %v1084, %v1081
        %v1289 = vpack.c.b16 %v1085, %v1082
        %v1290 = vpack.c.b16 %v1086, %v1083
        %v1291 = vpack.c.b16 %v1090, %v1087
        %v1292 = vpack.c.b16 %v1091, %v1088
        %v1293 = vpack.c.b16 %v1092, %v1089
        %v1294 = vpack.c.b16 %v1096, %v1093
        %v1295 = vpack.c.b16 %v1097, %v1094
        %v1296 = vpack.c.b16 %v1098, %v1095
        %v1297 = vpack.c.b16 %v1102, %v1099
        %v1298 = vpack.c.b16 %v1103, %v1100
        %v1299 = vpack.c.b16 %v1104, %v1101
        %v1300 = vpack.c.b16 %v1108, %v1105
        %v1301 = vpack.c.b16 %v1109, %v1106
        %v1302 = vpack.c.b16 %v1110, %v1107
        %v1303 = vpack.c.b16 %v1114, %v1111
        %v1304 = vpack.c.b16 %v1115, %v1112
        %v1305 = vpack.c.b16 %v1116, %v1113
        %v1306 = vpack.c.b16 %v1120, %v1117
        %v1307 = vpack.c.b16 %v1121, %v1118
        %v1308 = vpack.c.b16 %v1122, %v1119
        %v1309 = vpack.c.b16 %v1126, %v1123
        %v1310 = vpack.c.b16 %v1127, %v1124
        %v1311 = vpack.c.b16 %v1128, %v1125
        %v1312 = vpack.c.b16 %v1132, %v1129
        %v1313 = vpack.c.b16 %v1133, %v1130
        %v1314 = vpack.c.b16 %v1134, %v1131
        %v1315 = vpack.c.b16 %v1138, %v1135
        %v1316 = vpack.c.b16 %v1139, %v1136
        %v1317 = vpack.c.b16 %v1140, %v1137
        %v1318 = vpack.c.b16 %v1144, %v1141
        %v1319 = vpack.c.b16 %v1145, %v1142
        %v1320 = vpack.c.b16 %v1146, %v1143
        %v1321 = vpack.c.b16 %v1150, %v1147
        %v1322 = vpack.c.b16 %v1151, %v1148
        %v1323 = vpack.c.b16 %v1152, %v1149
        %v1324 = vpack.c.b16 %v1156, %v1153
        %v1325 = vpack.c.b16 %v1157, %v1154
        %v1326 = vpack.c.b16 %v1158, %v1155
        %1495 = vmatprep.subr.bf16.mxu0 %v1160
        %1496 = vmatpush1.bf16.msra.mxu0 %v1159
        %1497 = vmatprep.subr.bf16.mxu0 %v1163
        %1498 = vmatpush1.bf16.msra.mxu0 %v1162
        %1499 = vmatprep.subr.bf16.mxu0 %v1166
        %1500 = vmatpush1.bf16.msra.mxu0 %v1165
        %1501 = vmatprep.subr.bf16.mxu0 %v1169
        %1502 = vmatpush1.bf16.msra.mxu0 %v1168
        %1503 = vmatprep.subr.bf16.mxu0 %v1172
        %1504 = vmatpush1.bf16.msra.mxu0 %v1171
        %1505 = vmatprep.subr.bf16.mxu0 %v1175
        %1506 = vmatpush1.bf16.msra.mxu0 %v1174
        %1507 = vmatprep.subr.bf16.mxu0 %v1178
        %1508 = vmatpush1.bf16.msra.mxu0 %v1177
        %1509 = vmatprep.subr.bf16.mxu0 %v1181
        %1510 = vmatpush1.bf16.msra.mxu0 %v1180
        %1511 = vmatprep.subr.bf16.mxu0 %v1184
        %1512 = vmatpush1.bf16.msra.mxu0 %v1183
        %1513 = vmatprep.subr.bf16.mxu0 %v1187
        %1514 = vmatpush1.bf16.msra.mxu0 %v1186
        %1515 = vmatprep.subr.bf16.mxu0 %v1190
        %1516 = vmatpush1.bf16.msra.mxu0 %v1189
        %1517 = vmatprep.subr.bf16.mxu0 %v1193
        %1518 = vmatpush1.bf16.msra.mxu0 %v1192
        %1519 = vmatprep.subr.bf16.mxu0 %v1196
        %1520 = vmatpush1.bf16.msra.mxu0 %v1195
        %1521 = vmatprep.subr.bf16.mxu0 %v1199
        %1522 = vmatpush1.bf16.msra.mxu0 %v1198
        %1523 = vmatprep.subr.bf16.mxu0 %v1202
        %1524 = vmatpush1.bf16.msra.mxu0 %v1201
        %1525 = vmatprep.subr.bf16.mxu0 %v1205
        %1526 = vmatpush1.bf16.msra.mxu0 %v1204
        %1527 = vmatprep.mubr.bf16.mxu0 %v586
        %1528 = vmatmul.mubr.bf16.gmra.mrb[0].mxu0 %v585
        %v1529 = vpop.f32.mrb[0].mxu0
        %v1530 = vadd.f32 0.0, %v1529
        %v1531 = vpop.f32.mrb[0].mxu0
        %v1532 = vadd.f32 0.0, %v1531
        %v1533 = vpop.f32.mrb[0].mxu0
        %v1534 = vadd.f32 0.0, %v1533
        %v1535 = vpop.f32.mrb[0].mxu0
        %v1536 = vadd.f32 0.0, %v1535
        %1537 = vdwg.mxu0
        %1538 = vmatprep.subr.bf16.mxu0 %v1208
        %1539 = vmatpush1.bf16.msra.mxu0 %v1207
        %1540 = vmatprep.subr.bf16.mxu0 %v1211
        %1541 = vmatpush1.bf16.msra.mxu0 %v1210
        %1542 = vmatprep.subr.bf16.mxu0 %v1214
        %1543 = vmatpush1.bf16.msra.mxu0 %v1213
        %1544 = vmatprep.subr.bf16.mxu0 %v1217
        %1545 = vmatpush1.bf16.msra.mxu0 %v1216
        %1546 = vmatprep.subr.bf16.mxu0 %v1220
        %1547 = vmatpush1.bf16.msra.mxu0 %v1219
        %1548 = vmatprep.subr.bf16.mxu0 %v1223
        %1549 = vmatpush1.bf16.msra.mxu0 %v1222
        %1550 = vmatprep.subr.bf16.mxu0 %v1226
        %1551 = vmatpush1.bf16.msra.mxu0 %v1225
        %1552 = vmatprep.subr.bf16.mxu0 %v1229
        %1553 = vmatpush1.bf16.msra.mxu0 %v1228
        %1554 = vmatprep.subr.bf16.mxu0 %v1232
        %1555 = vmatpush1.bf16.msra.mxu0 %v1231
        %1556 = vmatprep.subr.bf16.mxu0 %v1235
        %1557 = vmatpush1.bf16.msra.mxu0 %v1234
        %1558 = vmatprep.subr.bf16.mxu0 %v1238
        %1559 = vmatpush1.bf16.msra.mxu0 %v1237
        %1560 = vmatprep.subr.bf16.mxu0 %v1241
        %1561 = vmatpush1.bf16.msra.mxu0 %v1240
        %1562 = vmatprep.subr.bf16.mxu0 %v1244
        %1563 = vmatpush1.bf16.msra.mxu0 %v1243
        %1564 = vmatprep.subr.bf16.mxu0 %v1247
        %1565 = vmatpush1.bf16.msra.mxu0 %v1246
        %1566 = vmatprep.subr.bf16.mxu0 %v1250
        %1567 = vmatpush1.bf16.msra.mxu0 %v1249
        %1568 = vmatprep.subr.bf16.mxu0 %v1253
        %1569 = vmatpush1.bf16.msra.mxu0 %v1252
        %1570 = vmatprep.mubr.bf16.mxu0 %v588
        %1571 = vmatmul.mubr.bf16.gmra.mrb[0].mxu0 %v587
        %v1572 = vpop.f32.mrb[0].mxu0
        %v1573 = vadd.f32 %v1530, %v1572
        %v1574 = vpop.f32.mrb[0].mxu0
        %v1575 = vadd.f32 %v1532, %v1574
        %v1576 = vpop.f32.mrb[0].mxu0
        %v1577 = vadd.f32 %v1534, %v1576
        %v1578 = vpop.f32.mrb[0].mxu0
        %v1579 = vadd.f32 %v1536, %v1578
        %1580 = vdwg.mxu0
        %1581 = vmatprep.subr.bf16.mxu0 %v1256
        %1582 = vmatpush1.bf16.msra.mxu0 %v1255
        %1583 = vmatprep.subr.bf16.mxu0 %v1259
        %1584 = vmatpush1.bf16.msra.mxu0 %v1258
        %1585 = vmatprep.subr.bf16.mxu0 %v1262
        %1586 = vmatpush1.bf16.msra.mxu0 %v1261
        %1587 = vmatprep.subr.bf16.mxu0 %v1265
        %1588 = vmatpush1.bf16.msra.mxu0 %v1264
        %1589 = vmatprep.subr.bf16.mxu0 %v1268
        %1590 = vmatpush1.bf16.msra.mxu0 %v1267
        %1591 = vmatprep.subr.bf16.mxu0 %v1271
        %1592 = vmatpush1.bf16.msra.mxu0 %v1270
        %1593 = vmatprep.subr.bf16.mxu0 %v1274
        %1594 = vmatpush1.bf16.msra.mxu0 %v1273
        %1595 = vmatprep.subr.bf16.mxu0 %v1277
        %1596 = vmatpush1.bf16.msra.mxu0 %v1276
        %1597 = vmatprep.subr.bf16.mxu0 %v1280
        %1598 = vmatpush1.bf16.msra.mxu0 %v1279
        %1599 = vmatprep.subr.bf16.mxu0 %v1283
        %1600 = vmatpush1.bf16.msra.mxu0 %v1282
        %1601 = vmatprep.subr.bf16.mxu0 %v1286
        %1602 = vmatpush1.bf16.msra.mxu0 %v1285
        %1603 = vmatprep.subr.bf16.mxu0 %v1289
        %1604 = vmatpush1.bf16.msra.mxu0 %v1288
        %1605 = vmatprep.subr.bf16.mxu0 %v1292
        %1606 = vmatpush1.bf16.msra.mxu0 %v1291
        %1607 = vmatprep.subr.bf16.mxu0 %v1295
        %1608 = vmatpush1.bf16.msra.mxu0 %v1294
        %1609 = vmatprep.subr.bf16.mxu0 %v1298
        %1610 = vmatpush1.bf16.msra.mxu0 %v1297
        %1611 = vmatprep.subr.bf16.mxu0 %v1301
        %1612 = vmatpush1.bf16.msra.mxu0 %v1300
        %1613 = vmatprep.mubr.bf16.mxu0 %v590
        %1614 = vmatmul.mubr.bf16.gmra.mrb[0].mxu0 %v589
        %v1615 = vpop.f32.mrb[0].mxu0
        %v1616 = vadd.f32 %v1573, %v1615
        %v1617 = vpop.f32.mrb[0].mxu0
        %v1618 = vadd.f32 %v1575, %v1617
        %v1619 = vpop.f32.mrb[0].mxu0
        %v1620 = vadd.f32 %v1577, %v1619
        %v1621 = vpop.f32.mrb[0].mxu0
        %v1622 = vadd.f32 %v1579, %v1621
        %1623 = vdwg.mxu0
        %1624 = vmatprep.subr.bf16.mxu0 %v1304
        %1625 = vmatpush1.bf16.msra.mxu0 %v1303
        %1626 = vmatprep.subr.bf16.mxu0 %v1307
        %1627 = vmatpush1.bf16.msra.mxu0 %v1306
        %1628 = vmatprep.subr.bf16.mxu0 %v1310
        %1629 = vmatpush1.bf16.msra.mxu0 %v1309
        %1630 = vmatprep.subr.bf16.mxu0 %v1313
        %1631 = vmatpush1.bf16.msra.mxu0 %v1312
        %1632 = vmatprep.subr.bf16.mxu0 %v1316
        %1633 = vmatpush1.bf16.msra.mxu0 %v1315
        %1634 = vmatprep.subr.bf16.mxu0 %v1319
        %1635 = vmatpush1.bf16.msra.mxu0 %v1318
        %1636 = vmatprep.subr.bf16.mxu0 %v1322
        %1637 = vmatpush1.bf16.msra.mxu0 %v1321
        %1638 = vmatprep.subr.bf16.mxu0 %v1325
        %1639 = vmatpush1.bf16.msra.mxu0 %v1324
        %1640 = vmatprep.subr.bf16.mxu0 0
        %1641 = vmatpush1.bf16.msra.mxu0 0
        %1642 = vmatprep.subr.bf16.mxu0 0
        %1643 = vmatpush1.bf16.msra.mxu0 0
        %1644 = vmatprep.subr.bf16.mxu0 0
        %1645 = vmatpush1.bf16.msra.mxu0 0
        %1646 = vmatprep.subr.bf16.mxu0 0
        %1647 = vmatpush1.bf16.msra.mxu0 0
        %1648 = vmatprep.subr.bf16.mxu0 0
        %1649 = vmatpush1.bf16.msra.mxu0 0
        %1650 = vmatprep.subr.bf16.mxu0 0
        %1651 = vmatpush1.bf16.msra.mxu0 0
        %1652 = vmatprep.subr.bf16.mxu0 0
        %1653 = vmatpush1.bf16.msra.mxu0 0
        %1654 = vmatprep.subr.bf16.mxu0 0
        %1655 = vmatpush1.bf16.msra.mxu0 0
        %1656 = vmatprep.mubr.bf16.mxu0 0
        %1657 = vmatmul.mubr.bf16.gmra.mrb[0].mxu0 %v591
        %v1658 = vpop.f32.mrb[0].mxu0
        %v1659 = vadd.f32 %v1616, %v1658
        %v1660 = vpop.f32.mrb[0].mxu0
        %v1661 = vadd.f32 %v1618, %v1660
        %v1662 = vpop.f32.mrb[0].mxu0
        %v1663 = vadd.f32 %v1620, %v1662
        %v1664 = vpop.f32.mrb[0].mxu0
        %v1665 = vadd.f32 %v1622, %v1664
        %1666 = vdwg.mxu0
        %1667 = vmatprep.subr.bf16.mxu0 0
        %1668 = vmatpush1.bf16.msra.mxu0 %v1161
        %1669 = vmatprep.subr.bf16.mxu0 0
        %1670 = vmatpush1.bf16.msra.mxu0 %v1164
        %1671 = vmatprep.subr.bf16.mxu0 0
        %1672 = vmatpush1.bf16.msra.mxu0 %v1167
        %1673 = vmatprep.subr.bf16.mxu0 0
        %1674 = vmatpush1.bf16.msra.mxu0 %v1170
        %1675 = vmatprep.subr.bf16.mxu0 0
        %1676 = vmatpush1.bf16.msra.mxu0 %v1173
        %1677 = vmatprep.subr.bf16.mxu0 0
        %1678 = vmatpush1.bf16.msra.mxu0 %v1176
        %1679 = vmatprep.subr.bf16.mxu0 0
        %1680 = vmatpush1.bf16.msra.mxu0 %v1179
        %1681 = vmatprep.subr.bf16.mxu0 0
        %1682 = vmatpush1.bf16.msra.mxu0 %v1182
        %1683 = vmatprep.subr.bf16.mxu0 0
        %1684 = vmatpush1.bf16.msra.mxu0 %v1185
        %1685 = vmatprep.subr.bf16.mxu0 0
        %1686 = vmatpush1.bf16.msra.mxu0 %v1188
        %1687 = vmatprep.subr.bf16.mxu0 0
        %1688 = vmatpush1.bf16.msra.mxu0 %v1191
        %1689 = vmatprep.subr.bf16.mxu0 0
        %1690 = vmatpush1.bf16.msra.mxu0 %v1194
        %1691 = vmatprep.subr.bf16.mxu0 0
        %1692 = vmatpush1.bf16.msra.mxu0 %v1197
        %1693 = vmatprep.subr.bf16.mxu0 0
        %1694 = vmatpush1.bf16.msra.mxu0 %v1200
        %1695 = vmatprep.subr.bf16.mxu0 0
        %1696 = vmatpush1.bf16.msra.mxu0 %v1203
        %1697 = vmatprep.subr.bf16.mxu0 0
        %1698 = vmatpush1.bf16.msra.mxu0 %v1206
        %1699 = vmatprep.mubr.bf16.mxu0 %v586
        %1700 = vmatmul.mubr.bf16.gmra.mrb[0].mxu0 %v585
        %v1701 = vpop.f32.mrb[0].mxu0
        %v1702 = vadd.f32 0.0, %v1701
        %v1703 = vpop.f32.mrb[0].mxu0
        %v1704 = vpop.f32.mrb[0].mxu0
        %v1705 = vadd.f32 0.0, %v1704
        %v1706 = vpop.f32.mrb[0].mxu0
        %1707 = vdwg.mxu0
        %1708 = vmatprep.subr.bf16.mxu0 0
        %1709 = vmatpush1.bf16.msra.mxu0 %v1209
        %1710 = vmatprep.subr.bf16.mxu0 0
        %1711 = vmatpush1.bf16.msra.mxu0 %v1212
        %1712 = vmatprep.subr.bf16.mxu0 0
        %1713 = vmatpush1.bf16.msra.mxu0 %v1215
        %1714 = vmatprep.subr.bf16.mxu0 0
        %1715 = vmatpush1.bf16.msra.mxu0 %v1218
        %1716 = vmatprep.subr.bf16.mxu0 0
        %1717 = vmatpush1.bf16.msra.mxu0 %v1221
        %1718 = vmatprep.subr.bf16.mxu0 0
        %1719 = vmatpush1.bf16.msra.mxu0 %v1224
        %1720 = vmatprep.subr.bf16.mxu0 0
        %1721 = vmatpush1.bf16.msra.mxu0 %v1227
        %1722 = vmatprep.subr.bf16.mxu0 0
        %1723 = vmatpush1.bf16.msra.mxu0 %v1230
        %1724 = vmatprep.subr.bf16.mxu0 0
        %1725 = vmatpush1.bf16.msra.mxu0 %v1233
        %1726 = vmatprep.subr.bf16.mxu0 0
        %1727 = vmatpush1.bf16.msra.mxu0 %v1236
        %1728 = vmatprep.subr.bf16.mxu0 0
        %1729 = vmatpush1.bf16.msra.mxu0 %v1239
        %1730 = vmatprep.subr.bf16.mxu0 0
        %1731 = vmatpush1.bf16.msra.mxu0 %v1242
        %1732 = vmatprep.subr.bf16.mxu0 0
        %1733 = vmatpush1.bf16.msra.mxu0 %v1245
        %1734 = vmatprep.subr.bf16.mxu0 0
        %1735 = vmatpush1.bf16.msra.mxu0 %v1248
        %1736 = vmatprep.subr.bf16.mxu0 0
        %1737 = vmatpush1.bf16.msra.mxu0 %v1251
        %1738 = vmatprep.subr.bf16.mxu0 0
        %1739 = vmatpush1.bf16.msra.mxu0 %v1254
        %1740 = vmatprep.mubr.bf16.mxu0 %v588
        %1741 = vmatmul.mubr.bf16.gmra.mrb[0].mxu0 %v587
        %v1742 = vpop.f32.mrb[0].mxu0
        %v1743 = vadd.f32 %v1702, %v1742
        %v1744 = vpop.f32.mrb[0].mxu0
        %v1745 = vpop.f32.mrb[0].mxu0
        %v1746 = vadd.f32 %v1705, %v1745
        %v1747 = vpop.f32.mrb[0].mxu0
        %1748 = vdwg.mxu0
        %1749 = vmatprep.subr.bf16.mxu0 0
        %1750 = vmatpush1.bf16.msra.mxu0 %v1257
        %1751 = vmatprep.subr.bf16.mxu0 0
        %1752 = vmatpush1.bf16.msra.mxu0 %v1260
        %1753 = vmatprep.subr.bf16.mxu0 0
        %1754 = vmatpush1.bf16.msra.mxu0 %v1263
        %1755 = vmatprep.subr.bf16.mxu0 0
        %1756 = vmatpush1.bf16.msra.mxu0 %v1266
        %1757 = vmatprep.subr.bf16.mxu0 0
        %1758 = vmatpush1.bf16.msra.mxu0 %v1269
        %1759 = vmatprep.subr.bf16.mxu0 0
        %1760 = vmatpush1.bf16.msra.mxu0 %v1272
        %1761 = vmatprep.subr.bf16.mxu0 0
        %1762 = vmatpush1.bf16.msra.mxu0 %v1275
        %1763 = vmatprep.subr.bf16.mxu0 0
        %1764 = vmatpush1.bf16.msra.mxu0 %v1278
        %1765 = vmatprep.subr.bf16.mxu0 0
        %1766 = vmatpush1.bf16.msra.mxu0 %v1281
        %1767 = vmatprep.subr.bf16.mxu0 0
        %1768 = vmatpush1.bf16.msra.mxu0 %v1284
        %1769 = vmatprep.subr.bf16.mxu0 0
        %1770 = vmatpush1.bf16.msra.mxu0 %v1287
        %1771 = vmatprep.subr.bf16.mxu0 0
        %1772 = vmatpush1.bf16.msra.mxu0 %v1290
        %1773 = vmatprep.subr.bf16.mxu0 0
        %1774 = vmatpush1.bf16.msra.mxu0 %v1293
        %1775 = vmatprep.subr.bf16.mxu0 0
        %1776 = vmatpush1.bf16.msra.mxu0 %v1296
        %1777 = vmatprep.subr.bf16.mxu0 0
        %1778 = vmatpush1.bf16.msra.mxu0 %v1299
        %1779 = vmatprep.subr.bf16.mxu0 0
        %1780 = vmatpush1.bf16.msra.mxu0 %v1302
        %1781 = vmatprep.mubr.bf16.mxu0 %v590
        %1782 = vmatmul.mubr.bf16.gmra.mrb[0].mxu0 %v589
        %v1783 = vpop.f32.mrb[0].mxu0
        %v1784 = vadd.f32 %v1743, %v1783
        %v1785 = vpop.f32.mrb[0].mxu0
        %v1786 = vpop.f32.mrb[0].mxu0
        %v1787 = vadd.f32 %v1746, %v1786
        %v1788 = vpop.f32.mrb[0].mxu0
        %1789 = vdwg.mxu0
        %1790 = vmatprep.subr.bf16.mxu0 0
        %1791 = vmatpush1.bf16.msra.mxu0 %v1305
        %1792 = vmatprep.subr.bf16.mxu0 0
        %1793 = vmatpush1.bf16.msra.mxu0 %v1308
        %1794 = vmatprep.subr.bf16.mxu0 0
        %1795 = vmatpush1.bf16.msra.mxu0 %v1311
        %1796 = vmatprep.subr.bf16.mxu0 0
        %1797 = vmatpush1.bf16.msra.mxu0 %v1314
        %1798 = vmatprep.subr.bf16.mxu0 0
        %1799 = vmatpush1.bf16.msra.mxu0 %v1317
        %1800 = vmatprep.subr.bf16.mxu0 0
        %1801 = vmatpush1.bf16.msra.mxu0 %v1320
        %1802 = vmatprep.subr.bf16.mxu0 0
        %1803 = vmatpush1.bf16.msra.mxu0 %v1323
        %1804 = vmatprep.subr.bf16.mxu0 0
        %1805 = vmatpush1.bf16.msra.mxu0 %v1326
        %1806 = vmatprep.subr.bf16.mxu0 0
        %1807 = vmatpush1.bf16.msra.mxu0 0
        %1808 = vmatprep.subr.bf16.mxu0 0
        %1809 = vmatpush1.bf16.msra.mxu0 0
        %1810 = vmatprep.subr.bf16.mxu0 0
        %1811 = vmatpush1.bf16.msra.mxu0 0
        %1812 = vmatprep.subr.bf16.mxu0 0
        %1813 = vmatpush1.bf16.msra.mxu0 0
        %1814 = vmatprep.subr.bf16.mxu0 0
        %1815 = vmatpush1.bf16.msra.mxu0 0
        %1816 = vmatprep.subr.bf16.mxu0 0
        %1817 = vmatpush1.bf16.msra.mxu0 0
        %1818 = vmatprep.subr.bf16.mxu0 0
        %1819 = vmatpush1.bf16.msra.mxu0 0
        %1820 = vmatprep.subr.bf16.mxu0 0
        %1821 = vmatpush1.bf16.msra.mxu0 0
        %1822 = vmatprep.mubr.bf16.mxu0 0
        %1823 = vmatmul.mubr.bf16.gmra.mrb[0].mxu0 %v591
        %v1824 = vpop.f32.mrb[0].mxu0
        %v1825 = vadd.f32 %v1784, %v1824
        %v1826 = vpop.f32.mrb[0].mxu0
        %v1827 = vpop.f32.mrb[0].mxu0
        %v1828 = vadd.f32 %v1787, %v1827
        %v1829 = vpop.f32.mrb[0].mxu0
        %1830 = vdwg.mxu0
        %v1831 = vadd.f32 %v325, %v1659
        %v1832 = vadd.f32 %v326, %v1661
        %v1833 = vadd.f32 %v327, %v1825
        %v1834 = vadd.f32 %v328, %v1663
        %v1835 = vadd.f32 %v329, %v1665
        %v1836 = vadd.f32 %v330, %v1828
        %1837 = vst [vmem:[#allocation2] sm:$0xff] %v1831
        %1838 = vst [vmem:[#allocation2 + $0x8] sm:$0xff] %v1832
        %vm1839 = vcmask 121856
        %1840 = vst.msk [vmem:[#allocation2 + $0x10] sm:$0xff] %vm1839, %v1833
        %1841 = vst [vmem:[#allocation2 + $0x18] sm:$0xff] %v1834
        %1842 = vst [vmem:[#allocation2 + $0x20] sm:$0xff] %v1835
        %1843 = vst.msk [vmem:[#allocation2 + $0x28] sm:$0xff] %vm1839, %v1836
        %p1844 = scmp.eq.s32.totalorder %s21, 3
        // Predicated region
        $region71: #{tpu_custom_call.1} parent=61 // pred_check
          %p1845 = pneg %p1844
        $region72: #{tpu_custom_call.1} parent=61 // pred_check_branch
          %1847 = sbr.rel (%p1845) target = $region74
        $region73: #{tpu_custom_call.1} parent=61 // pred_region
          %v1848 = vld [vmem:[#allocation2] sm:$0xff]
          %v1849 = vld [vmem:[#allocation2 + $0x8] sm:$0xff]
          %v1850 = vld [vmem:[#allocation2 + $0x10] sm:$0xff]
          %v1851 = vld [vmem:[#allocation2 + $0x18] sm:$0xff]
          %v1852 = vld [vmem:[#allocation2 + $0x20] sm:$0xff]
          %v1853 = vld [vmem:[#allocation2 + $0x28] sm:$0xff]
          %v1854 = vld [vmem:[%s2] sm:$0x7]
          %v1856 = vlaneseq
          %v1857 = vshrl.u32 %v1856, 7
          %v1858 = vsub.s32 0, %v1857
          %v1859 = vrot.slane %v1854, %v1858
          %v1860 = vlaneseq
          %v1861 = vshrl.u32 %v1860, 7
          %v1862 = vsub.s32 1, %v1861
          %v1863 = vrot.slane %v1854, %v1862
          %v1864 = vlaneseq
          %v1865 = vshrl.u32 %v1864, 7
          %v1866 = vsub.s32 2, %v1865
          %v1867 = vrot.slane %v1854, %v1866
          %v1871 = vadd.f32 %v1848, %v1859
          %v1872 = vadd.f32 %v1849, %v1863
          %v1873 = vadd.f32 %v1850, %v1867
          %v1874 = vadd.f32 %v1851, %v1859
          %v1875 = vadd.f32 %v1852, %v1863
          %v1876 = vadd.f32 %v1853, %v1867
          %v1877 = vmax.f32 %v1871, 0.0
          %v1878 = vmax.f32 %v1872, 0.0
          %v1879 = vmax.f32 %v1873, 0.0
          %v1880 = vmax.f32 %v1874, 0.0
          %v1881 = vmax.f32 %v1875, 0.0
          %v1882 = vmax.f32 %v1876, 0.0
          %v1883 = vld [vmem:[%s3] sm:$0xff]
          %v1884 = vld [vmem:[%s3 + $0x8] sm:$0xff]
          %v1885 = vld [vmem:[%s3 + $0x10] sm:$0xff]
          %v1886 = vld [vmem:[%s3 + $0x18] sm:$0xff]
          %v1887 = vld [vmem:[%s3 + $0x20] sm:$0xff]
          %v1888 = vld [vmem:[%s3 + $0x28] sm:$0xff]
          %v1889 = vld [vmem:[%s3 + $0x30] sm:$0xff]
          %v1890 = vld [vmem:[%s3 + $0x38] sm:$0xff]
          %v1891 = vld [vmem:[%s3 + $0x40] sm:$0xff]
          %v1892 = vld [vmem:[%s3 + $0x48] sm:$0xff]
          %v1893 = vld [vmem:[%s3 + $0x50] sm:$0xff]
          %v1894 = vld [vmem:[%s3 + $0x58] sm:$0xff]
          %v1895 = vld [vmem:[%s3 + $0x60] sm:$0xff]
          %v1896 = vld [vmem:[%s3 + $0x68] sm:$0xff]
          %v1897 = vld [vmem:[%s3 + $0x70] sm:$0xff]
          %v1898 = vld [vmem:[%s3 + $0x78] sm:$0xff]
          %v1899 = vld [vmem:[%s3 + $0x80] sm:$0xff]
          %v1900 = vld [vmem:[%s3 + $0x88] sm:$0xff]
          %v1901 = vld [vmem:[%s3 + $0x90] sm:$0xff]
          %v1902 = vld [vmem:[%s3 + $0x98] sm:$0xff]
          %v1903 = vld [vmem:[%s3 + $0xa0] sm:$0xff]
          %v1904 = vld [vmem:[%s3 + $0xa8] sm:$0xff]
          %v1905 = vld [vmem:[%s3 + $0xb0] sm:$0xff]
          %v1906 = vld [vmem:[%s3 + $0xb8] sm:$0xff]
          %v1907 = vld [vmem:[%s3 + $0xc0] sm:$0xff]
          %v1908 = vld [vmem:[%s3 + $0xc8] sm:$0xff]
          %v1909 = vld [vmem:[%s3 + $0xd0] sm:$0xff]
          %v1910 = vld [vmem:[%s3 + $0xd8] sm:$0xff]
          %v1911 = vld [vmem:[%s3 + $0xe0] sm:$0xff]
          %v1912 = vld [vmem:[%s3 + $0xe8] sm:$0xff]
          %v1913 = vld [vmem:[%s3 + $0xf0] sm:$0xff]
          %v1914 = vld [vmem:[%s3 + $0xf8] sm:$0xff]
          %v1915 = vld [vmem:[%s3 + $0x100] sm:$0xff]
          %v1916 = vld [vmem:[%s3 + $0x108] sm:$0x7f]
          %v1917 = vld [vmem:[%s4] sm:$0x1]
          %v1919 = vlaneseq
          %v1920 = vshrl.u32 %v1919, 7
          %v1921 = vsub.s32 0, %v1920
          %v1922 = vrot.slane %v1917, %v1921
          %v1925 = vsel %vm1839, %v1879, 0
          %v1928 = vsel %vm1839, %v1882, 0
          %vm1930 = vcmask 1046528
          %v1932 = vsel %vm1930, %v1916, 0
          %1934 = vmatprep.subr.mxu0 0.0
          %1935 = vmatpush1.msra.mxu0 %v1883
          %1936 = vmatprep.subr.mxu0 0.0
          %1937 = vmatpush1.msra.mxu0 %v1884
          %1938 = vmatprep.subr.mxu0 0.0
          %1939 = vmatpush1.msra.mxu0 %v1885
          %1940 = vmatprep.subr.mxu0 0.0
          %1941 = vmatpush1.msra.mxu0 %v1886
          %1942 = vmatprep.subr.mxu0 0.0
          %1943 = vmatpush1.msra.mxu0 %v1887
          %1944 = vmatprep.subr.mxu0 0.0
          %1945 = vmatpush1.msra.mxu0 %v1888
          %1946 = vmatprep.subr.mxu0 0.0
          %1947 = vmatpush1.msra.mxu0 %v1889
          %1948 = vmatprep.subr.mxu0 0.0
          %1949 = vmatpush1.msra.mxu0 %v1890
          %1950 = vmatprep.subr.mxu0 0.0
          %1951 = vmatpush1.msra.mxu0 %v1891
          %1952 = vmatprep.subr.mxu0 0.0
          %1953 = vmatpush1.msra.mxu0 %v1892
          %1954 = vmatprep.subr.mxu0 0.0
          %1955 = vmatpush1.msra.mxu0 %v1893
          %1956 = vmatprep.subr.mxu0 0.0
          %1957 = vmatpush1.msra.mxu0 %v1894
          %1958 = vmatprep.subr.mxu0 0.0
          %1959 = vmatpush1.msra.mxu0 %v1895
          %1960 = vmatprep.subr.mxu0 0.0
          %1961 = vmatpush1.msra.mxu0 %v1896
          %1962 = vmatprep.subr.mxu0 0.0
          %1963 = vmatpush1.msra.mxu0 %v1897
          %1964 = vmatprep.subr.mxu0 0.0
          %1965 = vmatpush1.msra.mxu0 %v1898
          %1966 = vmatprep.subr.mxu0 0.0
          %1967 = vmatpush1.msra.mxu0 %v1899
          %1968 = vmatprep.subr.mxu0 0.0
          %1969 = vmatpush1.msra.mxu0 %v1900
          %1970 = vmatprep.subr.mxu0 0.0
          %1971 = vmatpush1.msra.mxu0 %v1901
          %1972 = vmatprep.subr.mxu0 0.0
          %1973 = vmatpush1.msra.mxu0 %v1902
          %1974 = vmatprep.subr.mxu0 0.0
          %1975 = vmatpush1.msra.mxu0 %v1903
          %1976 = vmatprep.subr.mxu0 0.0
          %1977 = vmatpush1.msra.mxu0 %v1904
          %1978 = vmatprep.subr.mxu0 0.0
          %1979 = vmatpush1.msra.mxu0 %v1905
          %1980 = vmatprep.subr.mxu0 0.0
          %1981 = vmatpush1.msra.mxu0 %v1906
          %1982 = vmatprep.subr.mxu0 0.0
          %1983 = vmatpush1.msra.mxu0 %v1907
          %1984 = vmatprep.subr.mxu0 0.0
          %1985 = vmatpush1.msra.mxu0 %v1908
          %1986 = vmatprep.subr.mxu0 0.0
          %1987 = vmatpush1.msra.mxu0 %v1909
          %1988 = vmatprep.subr.mxu0 0.0
          %1989 = vmatpush1.msra.mxu0 %v1910
          %1990 = vmatprep.subr.mxu0 0.0
          %1991 = vmatpush1.msra.mxu0 %v1911
          %1992 = vmatprep.subr.mxu0 0.0
          %1993 = vmatpush1.msra.mxu0 %v1912
          %1994 = vmatprep.subr.mxu0 0.0
          %1995 = vmatpush1.msra.mxu0 %v1913
          %1996 = vmatprep.subr.mxu0 0.0
          %1997 = vmatpush1.msra.mxu0 %v1914
          %1998 = vmatprep.mubr.f32.mxu0 %v1878
          %1999 = vmatmul.mubr.f32.gmra.mrb[0].mxu0 %v1877
          %v2000 = vpop.f32.mrb[0].mxu0
          %v2001 = vadd.f32 %v1922, %v2000
          %v2002 = vpop.f32.mrb[0].mxu0
          %2003 = vmatprep.mubr.f32.mxu0 %v1881
          %2004 = vmatmul.mubr.f32.gmra.mrb[0].mxu0 %v1880
          %v2005 = vpop.f32.mrb[0].mxu0
          %v2006 = vadd.f32 %v1922, %v2005
          %v2007 = vpop.f32.mrb[0].mxu0
          %2008 = vdwg.mxu0
          %2009 = vmatprep.subr.mxu0 0.0
          %2010 = vmatpush1.msra.mxu0 %v1915
          %2011 = vmatprep.subr.mxu0 0.0
          %2012 = vmatpush1.msra.mxu0 %v1932
          %2013 = vmatprep.subr.mxu0 0.0
          %2014 = vmatpush1.msra.mxu0 0.0
          %2015 = vmatprep.subr.mxu0 0.0
          %2016 = vmatpush1.msra.mxu0 0.0
          %2017 = vmatprep.subr.mxu0 0.0
          %2018 = vmatpush1.msra.mxu0 0.0
          %2019 = vmatprep.subr.mxu0 0.0
          %2020 = vmatpush1.msra.mxu0 0.0
          %2021 = vmatprep.subr.mxu0 0.0
          %2022 = vmatpush1.msra.mxu0 0.0
          %2023 = vmatprep.subr.mxu0 0.0
          %2024 = vmatpush1.msra.mxu0 0.0
          %2025 = vmatprep.subr.mxu0 0.0
          %2026 = vmatpush1.msra.mxu0 0.0
          %2027 = vmatprep.subr.mxu0 0.0
          %2028 = vmatpush1.msra.mxu0 0.0
          %2029 = vmatprep.subr.mxu0 0.0
          %2030 = vmatpush1.msra.mxu0 0.0
          %2031 = vmatprep.subr.mxu0 0.0
          %2032 = vmatpush1.msra.mxu0 0.0
          %2033 = vmatprep.subr.mxu0 0.0
          %2034 = vmatpush1.msra.mxu0 0.0
          %2035 = vmatprep.subr.mxu0 0.0
          %2036 = vmatpush1.msra.mxu0 0.0
          %2037 = vmatprep.subr.mxu0 0.0
          %2038 = vmatpush1.msra.mxu0 0.0
          %2039 = vmatprep.subr.mxu0 0.0
          %2040 = vmatpush1.msra.mxu0 0.0
          %2041 = vmatprep.subr.mxu0 0.0
          %2042 = vmatpush1.msra.mxu0 0.0
          %2043 = vmatprep.subr.mxu0 0.0
          %2044 = vmatpush1.msra.mxu0 0.0
          %2045 = vmatprep.subr.mxu0 0.0
          %2046 = vmatpush1.msra.mxu0 0.0
          %2047 = vmatprep.subr.mxu0 0.0
          %2048 = vmatpush1.msra.mxu0 0.0
          %2049 = vmatprep.subr.mxu0 0.0
          %2050 = vmatpush1.msra.mxu0 0.0
          %2051 = vmatprep.subr.mxu0 0.0
          %2052 = vmatpush1.msra.mxu0 0.0
          %2053 = vmatprep.subr.mxu0 0.0
          %2054 = vmatpush1.msra.mxu0 0.0
          %2055 = vmatprep.subr.mxu0 0.0
          %2056 = vmatpush1.msra.mxu0 0.0
          %2057 = vmatprep.subr.mxu0 0.0
          %2058 = vmatpush1.msra.mxu0 0.0
          %2059 = vmatprep.subr.mxu0 0.0
          %2060 = vmatpush1.msra.mxu0 0.0
          %2061 = vmatprep.subr.mxu0 0.0
          %2062 = vmatpush1.msra.mxu0 0.0
          %2063 = vmatprep.subr.mxu0 0.0
          %2064 = vmatpush1.msra.mxu0 0.0
          %2065 = vmatprep.subr.mxu0 0.0
          %2066 = vmatpush1.msra.mxu0 0.0
          %2067 = vmatprep.subr.mxu0 0.0
          %2068 = vmatpush1.msra.mxu0 0.0
          %2069 = vmatprep.subr.mxu0 0.0
          %2070 = vmatpush1.msra.mxu0 0.0
          %2071 = vmatprep.subr.mxu0 0.0
          %2072 = vmatpush1.msra.mxu0 0.0
          %2073 = vmatprep.mubr.f32.mxu0 0.0
          %2074 = vmatmul.mubr.f32.gmra.mrb[0].mxu0 %v1925
          %v2075 = vpop.f32.mrb[0].mxu0
          %v2076 = vadd.f32 %v2001, %v2075
          %v2077 = vpop.f32.mrb[0].mxu0
          %2078 = vmatprep.mubr.f32.mxu0 0.0
          %2079 = vmatmul.mubr.f32.gmra.mrb[0].mxu0 %v1928
          %v2080 = vpop.f32.mrb[0].mxu0
          %v2081 = vadd.f32 %v2006, %v2080
          %v2082 = vpop.f32.mrb[0].mxu0
          %2083 = vdwg.mxu0
          %vm2084 = vcmask 48128
          %2085 = vst.msk [vmem:[%s311] sm:$0xff] %vm2084, %v2076
          %2086 = vst.msk [vmem:[%s311 + $0x8] sm:$0xff] %vm2084, %v2081
        $region74: #{tpu_custom_call.1} parent=61 // pred_fallthru
          _
        %s2087 = smul.u32 2, %s20
        %p2088 = scmp.lt.s32.totalorder %s2087, 1
        %s2089 = scalar_select %p2088, %s2087, 1
        %s2090 = smul.addr %s2089, 8
        %s2091 = scalar_lea.vmem %s5, %s2090
        // Predicated region
        $region75: #{tpu_custom_call.1} parent=61 // pred_check
          %p2092 = pneg %p163
        $region76: #{tpu_custom_call.1} parent=61 // pred_check_branch
          %2094 = sbr.rel (%p2092) target = $region78
        $region77: #{tpu_custom_call.1} parent=61 // pred_region
          %s2095 = smul.u32 2, %s20
        $region78: #{tpu_custom_call.1} parent=61 // pred_fallthru
          _
        // Predicated region
        $region79: #{tpu_custom_call.1} parent=61 // pred_check
          %p2096 = pneg %p163
        $region80: #{tpu_custom_call.1} parent=61 // pred_check_branch
          %2098 = sbr.rel (%p2096) target = $region82
        $region81: #{tpu_custom_call.1} parent=61 // pred_region
          %s2099 = smul.u32 2, %s20
          %p2100 = scmp.lt.s32.totalorder %s2099, 1
          %s2101 = scalar_select %p2100, %s2099, 1
          %s2102 = smul.addr %s2101, 8
          %s2103 = scalar_lea.vmem %s5, %s2102
        $region82: #{tpu_custom_call.1} parent=61 // pred_fallthru
          _
      $region62: #{tpu_custom_call.1} parent=5 // pred_fallthru
        _
      %p2104 = scmp.le.s32.totalorder 2, %s11
      // Predicated region
      $region83: #{tpu_custom_call.1} parent=5 // pred_check
        %p2105 = pneg %p2104
      $region84: #{tpu_custom_call.1} parent=5 // pred_check_branch
        %2107 = sbr.rel (%p2105) target = $region86
      $region85: #{tpu_custom_call.1} parent=5 // pred_region
        %s2108 = ssub.s32 %s11, 2
      $region86: #{tpu_custom_call.1} parent=5 // pred_fallthru
        _
    $region6: #{tpu_custom_call.1} parent=1 // loop_footer
      %s15 = sadd.s32 1, %s11
    $region7: #{tpu_custom_call.1} parent=1 // loop_footer_branch
      %10 = sbr.rel target = $region3
    $region8: #{tpu_custom_call.1} parent=1 // loop_exit
      _

</llo_original>
